<compile_context>
chip_gen: v7x
topology: tpu7x:2x2x1
jax: 0.10.0
libtpu: 0.0.40
codegen_flags: <defaults>
</compile_context>

<pallas_src>
import jax
import jax.numpy as jnp
from jax.experimental import pallas as pl
from jax.experimental.pallas import tpu as pltpu


# ----------------------------- elementwise helpers ----------------------------------------------

def _gelu(x):
    # tanh-approximate GELU (torch F.gelu(approximate='tanh')); keeps the transcendental on the
    # EUP slot instead of a long VALU erf polynomial.
    # TODO(synk): torch F.gelu defaults to exact erf; deviation is ~1e-3.
    c = 0.7978845608028654  # sqrt(2/pi)
    return 0.5 * x * (1.0 + jnp.tanh(c * (x + 0.044715 * x * x * x)))


def _sigmoid_eup(x):
    # sigmoid with the divide moved onto the EUP reciprocal slot (kernel-only helper).
    return pl.reciprocal(1.0 + jnp.exp(-x), approx=True)


def _rmsnorm(v, gain_scaled, eps):
    # module's RMSNorm: x / (||x||_2 + eps) * sqrt(dim) * g   (gain_scaled = sqrt(dim)*g,
    # precomputed on the host).  sqrt + reciprocal both go to the EUP (kernel-only helper).
    inv = pl.reciprocal(jnp.sqrt(jnp.sum(v * v, axis=-1, keepdims=True)) + eps, approx=True)
    return (v * inv) * gain_scaled


# ----------------------------- the fused kernel --------------------------------------------------
# grid = (B, nT);  one (batch, time-chunk) tile per step; RG-LRU state + conv halo carried in
# VMEM scratch across the "arbitrary" time axis.

def griffin_kernel(x_ref, xnxt_ref, gs_ref, w12_ref, b12_ref, wd_ref, bd_ref,
                   wir_ref, bir_ref, lamp_ref, h0_ref,
                   wm1_ref, bm1_ref, wm2_ref, bm2_ref,
                   out_ref, hlast_ref,
                   halo_ref, hstate_ref):
    _, TB, DP = x_ref.shape
    eps = 1e-6
    bf16 = jnp.bfloat16
    t = pl.program_id(1)
    nT = pl.num_programs(1)

    # ---- per-sequence init of carried state (left conv halo + RG-LRU hidden) ----
    @pl.when(t == 0)
    def _():
        halo_ref[...] = jnp.zeros_like(halo_ref)
        hstate_ref[...] = h0_ref[...].reshape(1, DP)

    gs = gs_ref[...]            # (1, DP)  = sqrt(D) * g
    w12 = w12_ref[...]          # (DP, 2DP) bf16
    b12 = b12_ref[...]          # (1, 2DP)

    x = x_ref[...].reshape(TB, DP)

    # ---- RMSNorm #1 + fused (linear_1 || linear_2) ----
    xn = _rmsnorm(x, gs, eps)
    l12 = jnp.dot(xn.astype(bf16), w12, preferred_element_type=jnp.float32) + b12
    l1 = l12[:, :DP]
    g2 = _gelu(l12[:, DP:])

    # ---- conv halos ----
    # left: last 4 rows of the previous chunk's linear_1 (carried in scratch; zeros at t==0)
    left4 = halo_ref[...][4:8, :]
    # right: first 4 rows of the NEXT chunk's linear_1, recomputed from its first 8 input rows;
    #        zeros for the last chunk (== 'same' zero padding)
    xr = xnxt_ref[...].reshape(8, DP)
    l1r = jnp.dot(_rmsnorm(xr, gs, eps).astype(bf16), w12,
                  preferred_element_type=jnp.float32)[:, :DP] + b12[:, :DP]
    right4 = jnp.where(t == nT - 1, 0.0, l1r[:4, :])

    # ---- depthwise Conv1d(k=9, 'same') with the pointwise Conv1d(k=1) pre-folded into its
    #      weights: nine accumulating matmuls on shifted views (no Toeplitz operand) ----
    l1ext = jnp.concatenate([left4, l1, right4], axis=0).astype(bf16)     # (TB + 8, DP)
    acc = jnp.zeros((TB, DP), jnp.float32)
    for k in range(9):
        acc = acc + jnp.dot(l1ext[k:k + TB, :], wd_ref[k],
                            preferred_element_type=jnp.float32)
    pw = acc + bd_ref[...]                       # == pointwise(depthwise(linear_1))

    # carry this chunk's linear_1 tail for the next chunk's left halo
    halo_ref[...] = l1[TB - 8:TB, :]

    # ---- RG-LRU ----
    # TODO(synk): RGLRU source not provided; standard Griffin convention assumed:
    #   i = sigmoid(Wi u + bi), r = sigmoid(Wr u + br), a = exp(-8 * r * softplus(Lambda)),
    #   h_t = a_t * h_{t-1} + sqrt(1 - a_t^2) * (i_t * u_t).  lamp_ref holds -8*softplus(Lambda).
    gates = _sigmoid_eup(jnp.dot(pw.astype(bf16), wir_ref[...],
                                 preferred_element_type=jnp.float32) + bir_ref[...])
    i_gate = gates[:, :DP]
    r_gate = gates[:, DP:]
    a = jnp.exp(r_gate * lamp_ref[...])
    bterm = jnp.sqrt(jnp.maximum(1.0 - a * a, 0.0)) * i_gate * pw

    # inclusive Hillis-Steele scan over the chunk; shifts on the XLU via pltpu.roll,
    # boundary handled with a hoisted iota mask.
    rows = jax.lax.broadcasted_iota(jnp.int32, (TB, DP), 0)
    A, Bv = a, bterm
    d = 1
    while d < TB:                                 # static Python loop (TB known at trace time)
        mask = rows >= d
        A_s = jnp.where(mask, pltpu.roll(A, shift=d, axis=0), 1.0)
        B_s = jnp.where(mask, pltpu.roll(Bv, shift=d, axis=0), 0.0)
        Bv = A * B_s + Bv                         # uses pre-update A
        A = A_s * A
        d *= 2
    lru = A * hstate_ref[...] + Bv                # (TB, DP); hidden state carried across chunks
    hstate_ref[...] = lru[TB - 1:TB, :]
    hlast_ref[...] = lru[TB - 1:TB, :].reshape(1, 1, DP)

    # ---- gate with gelu(linear_2) + residual 1 ----
    mid = lru * g2 + x

    # ---- RMSNorm #2 (shared params) + FeedForward: linear2(gelu(linear1(x)) * linear1(x)) ----
    mn2 = _rmsnorm(mid, gs, eps)
    h1 = jnp.dot(mn2.astype(bf16), wm1_ref[...],
                 preferred_element_type=jnp.float32) + bm1_ref[...]
    ff = jnp.dot((_gelu(h1) * h1).astype(bf16), wm2_ref[...],
                 preferred_element_type=jnp.float32) + bm2_ref[...]

    # ---- residual 2 / output (dropout p has no effect at inference) ----
    out_ref[...] = (mid + ff).reshape(1, TB, DP)


# ----------------------------- wrapper ------------------------------------------------------------

def _round_up(n, m=128):
    return ((n + m - 1) // m) * m


def _pad_last(a, n):
    pad = n - a.shape[-1]
    if pad == 0:
        return a
    return jnp.pad(a, [(0, 0)] * (a.ndim - 1) + [(0, pad)])


def _pad2(w, rows, cols):
    w = jnp.asarray(w, jnp.float32)
    return jnp.pad(w, ((0, rows - w.shape[0]), (0, cols - w.shape[1])))


def _row(v, n):
    v = jnp.asarray(v, jnp.float32).reshape(1, -1)
    return _pad_last(v, n)


def griffin_residual_block(x, params, prev_h=None, *, t_blk=None):
    """Fused GriffinResidualBlock forward.

    x: (B, T, D) float32.  params: unpadded weights in x @ W layout (a real PyTorch loading
    path must transpose nn.Linear / Conv1d weights).  Returns (y, h_last): the block output
    (B, T, D) and the final RG-LRU hidden state (B, D).
    """
    B, T, D = x.shape
    H = params["wm1"].shape[1]
    DP, HP = _round_up(D), _round_up(H)
    bf16 = jnp.bfloat16

    if t_blk is None:
        # TODO(synk): for real sizes pick t_blk >= 256 (v6e/v7x MXU M-dim) and/or pack batches.
        t_blk = T if T <= 256 else 256
    assert T % t_blk == 0 and t_blk % 8 == 0 and t_blk >= 8
    nT = T // t_blk

    if prev_h is None:
        prev_h = jnp.zeros((B, D), jnp.float32)

    # ---- host-side prep: lane padding (skipped when already a multiple of 128), weight
    #      fusions, pointwise-conv folding, precomputed gate/norm constants ----
    xp = _pad_last(x.astype(jnp.float32), DP)
    gs = _row(params["g"] * (float(D) ** 0.5), DP)                       # sqrt(dim) * g
    w12 = jnp.concatenate([_pad2(params["w1"], DP, DP),
                           _pad2(params["w2"], DP, DP)], axis=1).astype(bf16)
    b12 = jnp.concatenate([_row(params["b1"], DP), _row(params["b2"], DP)], axis=1)
    wd_fold = jnp.einsum("kio,op->kip", params["wd"], params["wp"])      # fold pointwise conv
    wdp = jnp.pad(wd_fold, ((0, 0), (0, DP - D), (0, DP - D))).astype(bf16)
    bdp = _row(params["bd"] @ params["wp"] + params["bp"], DP)
    wir = jnp.concatenate([_pad2(params["wi"], DP, DP),
                           _pad2(params["wr"], DP, DP)], axis=1).astype(bf16)
    bir = jnp.concatenate([_row(params["bi"], DP), _row(params["br"], DP)], axis=1)
    lamp = _row(-8.0 * jax.nn.softplus(params["lam"]), DP)               # -c * softplus(Lambda)
    h0 = _pad_last(prev_h.astype(jnp.float32).reshape(B, 1, D), DP)
    wm1 = _pad2(params["wm1"], DP, HP).astype(bf16)
    bm1 = _row(params["bm1"], HP)
    wm2 = _pad2(params["wm2"], HP, DP).astype(bf16)
    bm2 = _row(params["bm2"], DP)

    def const(shape):
        return pl.BlockSpec(shape, lambda b, t: (0,) * len(shape))

    nxt_blocks = t_blk // 8          # next chunk's first 8 rows, in 8-row block units
    last_blk8 = T // 8 - 1

    in_specs = [
        pl.BlockSpec((1, t_blk, DP), lambda b, t: (b, t, 0)),            # x, current chunk
        pl.BlockSpec((1, 8, DP),
                     lambda b, t: (b, jnp.minimum((t + 1) * nxt_blocks, last_blk8), 0)),
        const((1, DP)),                                                  # sqrt(D)*g
        const((DP, 2 * DP)), const((1, 2 * DP)),                         # W1||W2, b1||b2
        const((9, DP, DP)), const((1, DP)),                              # conv9 (pointwise folded)
        const((DP, 2 * DP)), const((1, 2 * DP)),                         # Wi||Wr, bi||br
        const((1, DP)),                                                  # -8*softplus(Lambda)
        pl.BlockSpec((1, 1, DP), lambda b, t: (b, 0, 0)),                # prev_h
        const((DP, HP)), const((1, HP)),                                 # FF linear1
        const((HP, DP)), const((1, DP)),                                 # FF linear2
    ]
    out_specs = (
        pl.BlockSpec((1, t_blk, DP), lambda b, t: (b, t, 0)),            # block output
        pl.BlockSpec((1, 1, DP), lambda b, t: (b, 0, 0)),                # final RG-LRU state
    )

    # advisory cost so XLA schedules the host-side pads/casts around the long fused kernel
    flops = 2 * B * T * DP * (13 * DP + 2 * HP)
    weight_bytes = 2 * DP * (13 * DP + 2 * HP)
    cost = pl.CostEstimate(flops=int(flops),
                           transcendentals=int(B * T * (6 * DP + HP)),
                           bytes_accessed=int(8 * B * T * DP + weight_bytes))

    out, h_last = pl.pallas_call(
        griffin_kernel,
        out_shape=(jax.ShapeDtypeStruct((B, T, DP), jnp.float32),
                   jax.ShapeDtypeStruct((B, 1, DP), jnp.float32)),
        grid=(B, nT),
        in_specs=in_specs,
        out_specs=out_specs,
        scratch_shapes=[pltpu.VMEM((8, DP), jnp.float32),     # linear_1 tail (left conv halo)
                        pltpu.VMEM((1, DP), jnp.float32)],    # RG-LRU hidden state
        compiler_params=pltpu.CompilerParams(
            dimension_semantics=("parallel", "arbitrary"),    # batch across TCs, time sequential
            vmem_limit_bytes=48 * 1024 * 1024),
        cost_estimate=cost,
    )(xp, xp, gs, w12, b12, wdp, bdp, wir, bir, lamp, h0, wm1, bm1, wm2, bm2)
    # TODO(synk): for real sizes, single-buffer the constant weight specs
    # (pipeline_mode=pl.Buffered(1)) to halve their VMEM footprint on v7x.

    y = out if DP == D else out[:, :, :D]
    h = h_last[:, 0, :] if DP == D else h_last[:, 0, :D]
    return y, h


# ----------------------------- pure-JAX reference (same math, unpadded f32) -----------------------

def griffin_reference(x, params, prev_h=None):
    B, T, D = x.shape
    eps = 1e-6
    scale = float(D) ** 0.5
    g = params["g"]

    def norm(v):
        n = jnp.sqrt(jnp.sum(v * v, axis=-1, keepdims=True)) + eps
        return v / n * scale * g

    if prev_h is None:
        prev_h = jnp.zeros((B, D), jnp.float32)

    xn = norm(x)
    l1 = xn @ params["w1"] + params["b1"]
    l2 = xn @ params["w2"] + params["b2"]
    l1p = jnp.pad(l1, ((0, 0), (4, 4), (0, 0)))
    conv = sum(l1p[:, k:k + T, :] @ params["wd"][k] for k in range(9)) + params["bd"]
    pw = conv @ params["wp"] + params["bp"]
    i = jax.nn.sigmoid(pw @ params["wi"] + params["bi"])
    r = jax.nn.sigmoid(pw @ params["wr"] + params["br"])
    a = jnp.exp(-8.0 * r * jax.nn.softplus(params["lam"]))
    b = jnp.sqrt(jnp.maximum(1.0 - a * a, 0.0)) * i * pw

    def step(h, ab):
        a_t, b_t = ab
        h = a_t * h + b_t
        return h, h

    _, hs = jax.lax.scan(step, prev_h, (jnp.swapaxes(a, 0, 1), jnp.swapaxes(b, 0, 1)))
    lru = jnp.swapaxes(hs, 0, 1)
    mid = lru * _gelu(l2) + x
    mn2 = norm(mid)
    h1 = mn2 @ params["wm1"] + params["bm1"]
    ff = (_gelu(h1) * h1) @ params["wm2"] + params["bm2"]
    return mid + ff, lru[:, -1, :]


# ----------------------------- demo ----------------------------------------------------------------

if __name__ == "__main__":
    B, T, D, MULT = 2, 16, 32, 2     # dim=32, mlp_mult=2, dropout=0.0

    key = jax.random.PRNGKey(0)
    keys = jax.random.split(key, 20)

    def w(k, shape, s=0.1):
        return jax.random.normal(k, shape, jnp.float32) * s

    params = dict(
        g=jnp.ones((D,), jnp.float32),                                  # RMSNorm gain
        w1=w(keys[0], (D, D)),  b1=w(keys[1], (D,)),                    # linear_1 (x @ W layout)
        w2=w(keys[2], (D, D)),  b2=w(keys[3], (D,)),                    # linear_2
        wd=w(keys[4], (9, D, D)), bd=w(keys[5], (D,)),                  # Conv1d k=9: wd[k][c_in,c_out]
        wp=w(keys[6], (D, D)),  bp=w(keys[7], (D,)),                    # Conv1d k=1 (pointwise)
        wi=w(keys[8], (D, D)),  bi=w(keys[9], (D,)),                    # RG-LRU input gate
        wr=w(keys[10], (D, D)), br=w(keys[11], (D,)),                   # RG-LRU recurrence gate
        lam=jnp.linspace(-4.0, -2.0, D, dtype=jnp.float32),             # RG-LRU Lambda
        wm1=w(keys[12], (D, D * MULT)), bm1=w(keys[13], (D * MULT,)),   # FeedForward.linear1
        wm2=w(keys[14], (D * MULT, D)), bm2=w(keys[15], (D,)),          # FeedForward.linear2
    )

    x = jax.random.normal(keys[16], (B, T, D), jnp.float32)
    prev_h = 0.5 * jax.random.normal(keys[17], (B, D), jnp.float32)

    # t_blk=8 -> two time chunks per sequence: exercises the carried conv halo + RG-LRU state.
    y, h_last = griffin_residual_block(x, params, prev_h, t_blk=8)
    jax.block_until_ready(y)

    y_ref, h_ref = griffin_reference(x, params, prev_h)
    assert y.shape == (B, T, D) and h_last.shape == (B, D)
    assert bool(jnp.all(jnp.isfinite(y)))
    max_err = float(jnp.max(jnp.abs(y - y_ref)))
    h_err = float(jnp.max(jnp.abs(h_last - h_ref)))
    assert max_err < 0.15 and h_err < 0.15, (max_err, h_err)
    print("KERNEL_OK")
</pallas_src>

<mosaic_0001>
module attributes {stable_mosaic.version = 11 : i64} {
  func.func @griffin_kernel(%arg0: i32, %arg1: i32, %arg2: memref<1x8x128xf32, #tpu.memory_space<vmem>>, %arg3: memref<1x8x128xf32, #tpu.memory_space<vmem>>, %arg4: memref<1x128xf32, #tpu.memory_space<vmem>>, %arg5: memref<128x256xbf16, #tpu.memory_space<vmem>>, %arg6: memref<1x256xf32, #tpu.memory_space<vmem>>, %arg7: memref<9x128x128xbf16, #tpu.memory_space<vmem>>, %arg8: memref<1x128xf32, #tpu.memory_space<vmem>>, %arg9: memref<128x256xbf16, #tpu.memory_space<vmem>>, %arg10: memref<1x256xf32, #tpu.memory_space<vmem>>, %arg11: memref<1x128xf32, #tpu.memory_space<vmem>>, %arg12: memref<1x1x128xf32, #tpu.memory_space<vmem>>, %arg13: memref<128x128xbf16, #tpu.memory_space<vmem>>, %arg14: memref<1x128xf32, #tpu.memory_space<vmem>>, %arg15: memref<128x128xbf16, #tpu.memory_space<vmem>>, %arg16: memref<1x128xf32, #tpu.memory_space<vmem>>, %arg17: memref<1x8x128xf32, #tpu.memory_space<vmem>>, %arg18: memref<1x1x128xf32, #tpu.memory_space<vmem>>, %arg19: memref<8x128xf32, #tpu.memory_space<vmem>>, %arg20: memref<1x128xf32, #tpu.memory_space<vmem>>) attributes {dimension_semantics = [#tpu.dimension_semantics<parallel>, #tpu.dimension_semantics<arbitrary>], iteration_bounds = array<i64: 2, 2>, scalar_prefetch = 0 : i64, scratch_operands = 2 : i64, tpu.core_type = #tpu.core_type<tc>, window_params = [{transform_indices = @transform_0, window_bounds = array<i64: 1, 8, 128>}, {transform_indices = @transform_1, window_bounds = array<i64: 1, 8, 128>}, {pipeline_mode = #tpu.pipeline_mode<synchronous>, transform_indices = @transform_2, window_bounds = array<i64: 1, 128>}, {pipeline_mode = #tpu.pipeline_mode<synchronous>, transform_indices = @transform_3, window_bounds = array<i64: 128, 256>}, {pipeline_mode = #tpu.pipeline_mode<synchronous>, transform_indices = @transform_4, window_bounds = array<i64: 1, 256>}, {pipeline_mode = #tpu.pipeline_mode<synchronous>, transform_indices = @transform_5, window_bounds = array<i64: 9, 128, 128>}, {pipeline_mode = #tpu.pipeline_mode<synchronous>, transform_indices = @transform_6, window_bounds = array<i64: 1, 128>}, {pipeline_mode = #tpu.pipeline_mode<synchronous>, transform_indices = @transform_7, window_bounds = array<i64: 128, 256>}, {pipeline_mode = #tpu.pipeline_mode<synchronous>, transform_indices = @transform_8, window_bounds = array<i64: 1, 256>}, {pipeline_mode = #tpu.pipeline_mode<synchronous>, transform_indices = @transform_9, window_bounds = array<i64: 1, 128>}, {transform_indices = @transform_10, window_bounds = array<i64: 1, 1, 128>}, {pipeline_mode = #tpu.pipeline_mode<synchronous>, transform_indices = @transform_11, window_bounds = array<i64: 128, 128>}, {pipeline_mode = #tpu.pipeline_mode<synchronous>, transform_indices = @transform_12, window_bounds = array<i64: 1, 128>}, {pipeline_mode = #tpu.pipeline_mode<synchronous>, transform_indices = @transform_13, window_bounds = array<i64: 128, 128>}, {pipeline_mode = #tpu.pipeline_mode<synchronous>, transform_indices = @transform_14, window_bounds = array<i64: 1, 128>}, {transform_indices = @transform_15, window_bounds = array<i64: 1, 8, 128>}, {transform_indices = @transform_16, window_bounds = array<i64: 1, 1, 128>}]} {
    %c0_i32 = arith.constant 0 : i32
    %0 = arith.cmpi eq, %arg1, %c0_i32 : i32
    %1 = arith.extui %0 : i1 to i32
    %c0_i32_0 = arith.constant 0 : i32
    %2 = arith.cmpi ne, %1, %c0_i32_0 : i32
    scf.if %2 {
      %cst_107 = arith.constant 0.000000e+00 : f32
      %226 = vector.broadcast %cst_107 : f32 to vector<8x128xf32>
      %c0_108 = arith.constant 0 : index
      %c0_109 = arith.constant 0 : index
      %227 = vector.load %arg19[%c0_108, %c0_109] : memref<8x128xf32, #tpu.memory_space<vmem>>, vector<8x128xf32>
      tpu.vector_store %arg19[%c0_108, %c0_109], %226 {strides = array<i32>} : memref<8x128xf32, #tpu.memory_space<vmem>>, vector<8x128xf32>,
      %c0_110 = arith.constant 0 : index
      %c0_111 = arith.constant 0 : index
      %c0_112 = arith.constant 0 : index
      %228 = vector.load %arg12[%c0_110, %c0_111, %c0_112] : memref<1x1x128xf32, #tpu.memory_space<vmem>>, vector<1x1x128xf32>
      %229 = vector.shape_cast %228 : vector<1x1x128xf32> to vector<1x128xf32>
      %c0_113 = arith.constant 0 : index
      %c0_114 = arith.constant 0 : index
      %230 = vector.load %arg20[%c0_113, %c0_114] : memref<1x128xf32, #tpu.memory_space<vmem>>, vector<1x128xf32>
      tpu.vector_store %arg20[%c0_113, %c0_114], %229 {strides = array<i32>} : memref<1x128xf32, #tpu.memory_space<vmem>>, vector<1x128xf32>,
    } else {
    }
    %c0 = arith.constant 0 : index
    %c0_1 = arith.constant 0 : index
    %3 = vector.load %arg4[%c0, %c0_1] : memref<1x128xf32, #tpu.memory_space<vmem>>, vector<1x128xf32>
    %c0_2 = arith.constant 0 : index
    %c0_3 = arith.constant 0 : index
    %4 = vector.load %arg5[%c0_2, %c0_3] : memref<128x256xbf16, #tpu.memory_space<vmem>>, vector<128x256xbf16>
    %c0_4 = arith.constant 0 : index
    %c0_5 = arith.constant 0 : index
    %5 = vector.load %arg6[%c0_4, %c0_5] : memref<1x256xf32, #tpu.memory_space<vmem>>, vector<1x256xf32>
    %c0_6 = arith.constant 0 : index
    %c0_7 = arith.constant 0 : index
    %c0_8 = arith.constant 0 : index
    %6 = vector.load %arg2[%c0_6, %c0_7, %c0_8] : memref<1x8x128xf32, #tpu.memory_space<vmem>>, vector<1x8x128xf32>
    %7 = vector.shape_cast %6 : vector<1x8x128xf32> to vector<8x128xf32>
    %8 = arith.mulf %7, %7 : vector<8x128xf32>
    %cst = arith.constant dense<0.000000e+00> : vector<8xf32>
    %9 = vector.multi_reduction <add>, %8, %cst [1] : vector<8x128xf32> to vector<8xf32>
    %10 = vector.shape_cast %9 : vector<8xf32> to vector<8x1xf32>
    %11 = math.sqrt %10 : vector<8x1xf32>
    %cst_9 = arith.constant 9.99999997E-7 : f32
    %12 = vector.broadcast %cst_9 : f32 to vector<8x1xf32>
    %13 = arith.addf %11, %12 : vector<8x1xf32>
    %14 = tpu.reciprocal %13 {approx = true} : vector<8x1xf32> -> vector<8x1xf32>
    %15 = vector.broadcast %14 : vector<8x1xf32> to vector<8x128xf32>
    %16 = arith.mulf %7, %15 : vector<8x128xf32>
    %17 = vector.broadcast %3 : vector<1x128xf32> to vector<8x128xf32>
    %18 = arith.mulf %16, %17 : vector<8x128xf32>
    %19 = arith.truncf %18 : vector<8x128xf32> to vector<8x128xbf16>
    %cst_10 = arith.constant dense<0.000000e+00> : vector<8x256xf32>
    %20 = tpu.matmul %19, %4, %cst_10 {dimension_numbers = #tpu.dot_dimension_numbers<[1], [0], [0], [1], [0, 0, 1, 1], [], []>} : vector<8x128xbf16>, vector<128x256xbf16>, vector<8x256xf32> -> vector<8x256xf32>
    %21 = vector.broadcast %5 : vector<1x256xf32> to vector<8x256xf32>
    %22 = arith.addf %20, %21 : vector<8x256xf32>
    %23 = vector.extract_strided_slice %22 {offsets = [0, 0], sizes = [8, 128], strides = [1, 1]} : vector<8x256xf32> to vector<8x128xf32>
    %24 = vector.extract_strided_slice %22 {offsets = [0, 128], sizes = [8, 128], strides = [1, 1]} : vector<8x256xf32> to vector<8x128xf32>
    %cst_11 = arith.constant 5.000000e-01 : f32
    %25 = vector.broadcast %cst_11 : f32 to vector<8x128xf32>
    %26 = arith.mulf %25, %24 : vector<8x128xf32>
    %cst_12 = arith.constant 4.471500e-02 : f32
    %27 = vector.broadcast %cst_12 : f32 to vector<8x128xf32>
    %28 = arith.mulf %27, %24 : vector<8x128xf32>
    %29 = arith.mulf %28, %24 : vector<8x128xf32>
    %30 = arith.mulf %29, %24 : vector<8x128xf32>
    %31 = arith.addf %24, %30 : vector<8x128xf32>
    %cst_13 = arith.constant 0.797884583 : f32
    %32 = vector.broadcast %cst_13 : f32 to vector<8x128xf32>
    %33 = arith.mulf %32, %31 : vector<8x128xf32>
    %34 = math.tanh %33 : vector<8x128xf32>
    %cst_14 = arith.constant 1.000000e+00 : f32
    %35 = vector.broadcast %cst_14 : f32 to vector<8x128xf32>
    %36 = arith.addf %35, %34 : vector<8x128xf32>
    %37 = arith.mulf %26, %36 : vector<8x128xf32>
    %c0_15 = arith.constant 0 : index
    %c0_16 = arith.constant 0 : index
    %38 = vector.load %arg19[%c0_15, %c0_16] : memref<8x128xf32, #tpu.memory_space<vmem>>, vector<8x128xf32>
    %39 = vector.extract_strided_slice %38 {offsets = [4, 0], sizes = [4, 128], strides = [1, 1]} : vector<8x128xf32> to vector<4x128xf32>
    %c0_17 = arith.constant 0 : index
    %c0_18 = arith.constant 0 : index
    %c0_19 = arith.constant 0 : index
    %40 = vector.load %arg3[%c0_17, %c0_18, %c0_19] : memref<1x8x128xf32, #tpu.memory_space<vmem>>, vector<1x8x128xf32>
    %41 = vector.shape_cast %40 : vector<1x8x128xf32> to vector<8x128xf32>
    %42 = arith.mulf %41, %41 : vector<8x128xf32>
    %cst_20 = arith.constant dense<0.000000e+00> : vector<8xf32>
    %43 = vector.multi_reduction <add>, %42, %cst_20 [1] : vector<8x128xf32> to vector<8xf32>
    %44 = vector.shape_cast %43 : vector<8xf32> to vector<8x1xf32>
    %45 = math.sqrt %44 : vector<8x1xf32>
    %cst_21 = arith.constant 9.99999997E-7 : f32
    %46 = vector.broadcast %cst_21 : f32 to vector<8x1xf32>
    %47 = arith.addf %45, %46 : vector<8x1xf32>
    %48 = tpu.reciprocal %47 {approx = true} : vector<8x1xf32> -> vector<8x1xf32>
    %49 = vector.broadcast %48 : vector<8x1xf32> to vector<8x128xf32>
    %50 = arith.mulf %41, %49 : vector<8x128xf32>
    %51 = vector.broadcast %3 : vector<1x128xf32> to vector<8x128xf32>
    %52 = arith.mulf %50, %51 : vector<8x128xf32>
    %53 = arith.truncf %52 : vector<8x128xf32> to vector<8x128xbf16>
    %cst_22 = arith.constant dense<0.000000e+00> : vector<8x256xf32>
    %54 = tpu.matmul %53, %4, %cst_22 {dimension_numbers = #tpu.dot_dimension_numbers<[1], [0], [0], [1], [0, 0, 1, 1], [], []>} : vector<8x128xbf16>, vector<128x256xbf16>, vector<8x256xf32> -> vector<8x256xf32>
    %55 = vector.extract_strided_slice %54 {offsets = [0, 0], sizes = [8, 128], strides = [1, 1]} : vector<8x256xf32> to vector<8x128xf32>
    %56 = vector.extract_strided_slice %5 {offsets = [0, 0], sizes = [1, 128], strides = [1, 1]} : vector<1x256xf32> to vector<1x128xf32>
    %57 = vector.broadcast %56 : vector<1x128xf32> to vector<8x128xf32>
    %58 = arith.addf %55, %57 : vector<8x128xf32>
    %c1_i32 = arith.constant 1 : i32
    %59 = arith.cmpi eq, %arg1, %c1_i32 : i32
    %60 = vector.extract_strided_slice %58 {offsets = [0, 0], sizes = [4, 128], strides = [1, 1]} : vector<8x128xf32> to vector<4x128xf32>
    %cst_23 = arith.constant 0.000000e+00 : f32
    %61 = vector.broadcast %cst_23 : f32 to vector<4x128xf32>
    %62 = arith.select %59, %61, %60 : vector<4x128xf32>
    %63 = tpu.concatenate %39, %23, %62 in 0 : vector<4x128xf32>, vector<8x128xf32>, vector<4x128xf32> -> vector<16x128xf32>
    %64 = arith.truncf %63 : vector<16x128xf32> to vector<16x128xbf16>
    %cst_24 = arith.constant 0.000000e+00 : f32
    %65 = vector.broadcast %cst_24 : f32 to vector<8x128xf32>
    %66 = vector.extract_strided_slice %64 {offsets = [0, 0], sizes = [8, 128], strides = [1, 1]} : vector<16x128xbf16> to vector<8x128xbf16>
    %c0_25 = arith.constant 0 : index
    %c0_26 = arith.constant 0 : index
    %c0_27 = arith.constant 0 : index
    %67 = vector.load %arg7[%c0_25, %c0_26, %c0_27] : memref<9x128x128xbf16, #tpu.memory_space<vmem>>, vector<1x128x128xbf16>
    %68 = vector.shape_cast %67 : vector<1x128x128xbf16> to vector<128x128xbf16>
    %cst_28 = arith.constant dense<0.000000e+00> : vector<8x128xf32>
    %69 = tpu.matmul %66, %68, %cst_28 {dimension_numbers = #tpu.dot_dimension_numbers<[1], [0], [0], [1], [0, 0, 1, 1], [], []>} : vector<8x128xbf16>, vector<128x128xbf16>, vector<8x128xf32> -> vector<8x128xf32>
    %70 = arith.addf %65, %69 : vector<8x128xf32>
    %71 = vector.extract_strided_slice %64 {offsets = [1, 0], sizes = [8, 128], strides = [1, 1]} : vector<16x128xbf16> to vector<8x128xbf16>
    %c1 = arith.constant 1 : index
    %c0_29 = arith.constant 0 : index
    %c0_30 = arith.constant 0 : index
    %72 = vector.load %arg7[%c1, %c0_29, %c0_30] : memref<9x128x128xbf16, #tpu.memory_space<vmem>>, vector<1x128x128xbf16>
    %73 = vector.shape_cast %72 : vector<1x128x128xbf16> to vector<128x128xbf16>
    %cst_31 = arith.constant dense<0.000000e+00> : vector<8x128xf32>
    %74 = tpu.matmul %71, %73, %cst_31 {dimension_numbers = #tpu.dot_dimension_numbers<[1], [0], [0], [1], [0, 0, 1, 1], [], []>} : vector<8x128xbf16>, vector<128x128xbf16>, vector<8x128xf32> -> vector<8x128xf32>
    %75 = arith.addf %70, %74 : vector<8x128xf32>
    %76 = vector.extract_strided_slice %64 {offsets = [2, 0], sizes = [8, 128], strides = [1, 1]} : vector<16x128xbf16> to vector<8x128xbf16>
    %c2 = arith.constant 2 : index
    %c0_32 = arith.constant 0 : index
    %c0_33 = arith.constant 0 : index
    %77 = vector.load %arg7[%c2, %c0_32, %c0_33] : memref<9x128x128xbf16, #tpu.memory_space<vmem>>, vector<1x128x128xbf16>
    %78 = vector.shape_cast %77 : vector<1x128x128xbf16> to vector<128x128xbf16>
    %cst_34 = arith.constant dense<0.000000e+00> : vector<8x128xf32>
    %79 = tpu.matmul %76, %78, %cst_34 {dimension_numbers = #tpu.dot_dimension_numbers<[1], [0], [0], [1], [0, 0, 1, 1], [], []>} : vector<8x128xbf16>, vector<128x128xbf16>, vector<8x128xf32> -> vector<8x128xf32>
    %80 = arith.addf %75, %79 : vector<8x128xf32>
    %81 = vector.extract_strided_slice %64 {offsets = [3, 0], sizes = [8, 128], strides = [1, 1]} : vector<16x128xbf16> to vector<8x128xbf16>
    %c3 = arith.constant 3 : index
    %c0_35 = arith.constant 0 : index
    %c0_36 = arith.constant 0 : index
    %82 = vector.load %arg7[%c3, %c0_35, %c0_36] : memref<9x128x128xbf16, #tpu.memory_space<vmem>>, vector<1x128x128xbf16>
    %83 = vector.shape_cast %82 : vector<1x128x128xbf16> to vector<128x128xbf16>
    %cst_37 = arith.constant dense<0.000000e+00> : vector<8x128xf32>
    %84 = tpu.matmul %81, %83, %cst_37 {dimension_numbers = #tpu.dot_dimension_numbers<[1], [0], [0], [1], [0, 0, 1, 1], [], []>} : vector<8x128xbf16>, vector<128x128xbf16>, vector<8x128xf32> -> vector<8x128xf32>
    %85 = arith.addf %80, %84 : vector<8x128xf32>
    %86 = vector.extract_strided_slice %64 {offsets = [4, 0], sizes = [8, 128], strides = [1, 1]} : vector<16x128xbf16> to vector<8x128xbf16>
    %c4 = arith.constant 4 : index
    %c0_38 = arith.constant 0 : index
    %c0_39 = arith.constant 0 : index
    %87 = vector.load %arg7[%c4, %c0_38, %c0_39] : memref<9x128x128xbf16, #tpu.memory_space<vmem>>, vector<1x128x128xbf16>
    %88 = vector.shape_cast %87 : vector<1x128x128xbf16> to vector<128x128xbf16>
    %cst_40 = arith.constant dense<0.000000e+00> : vector<8x128xf32>
    %89 = tpu.matmul %86, %88, %cst_40 {dimension_numbers = #tpu.dot_dimension_numbers<[1], [0], [0], [1], [0, 0, 1, 1], [], []>} : vector<8x128xbf16>, vector<128x128xbf16>, vector<8x128xf32> -> vector<8x128xf32>
    %90 = arith.addf %85, %89 : vector<8x128xf32>
    %91 = vector.extract_strided_slice %64 {offsets = [5, 0], sizes = [8, 128], strides = [1, 1]} : vector<16x128xbf16> to vector<8x128xbf16>
    %c5 = arith.constant 5 : index
    %c0_41 = arith.constant 0 : index
    %c0_42 = arith.constant 0 : index
    %92 = vector.load %arg7[%c5, %c0_41, %c0_42] : memref<9x128x128xbf16, #tpu.memory_space<vmem>>, vector<1x128x128xbf16>
    %93 = vector.shape_cast %92 : vector<1x128x128xbf16> to vector<128x128xbf16>
    %cst_43 = arith.constant dense<0.000000e+00> : vector<8x128xf32>
    %94 = tpu.matmul %91, %93, %cst_43 {dimension_numbers = #tpu.dot_dimension_numbers<[1], [0], [0], [1], [0, 0, 1, 1], [], []>} : vector<8x128xbf16>, vector<128x128xbf16>, vector<8x128xf32> -> vector<8x128xf32>
    %95 = arith.addf %90, %94 : vector<8x128xf32>
    %96 = vector.extract_strided_slice %64 {offsets = [6, 0], sizes = [8, 128], strides = [1, 1]} : vector<16x128xbf16> to vector<8x128xbf16>
    %c6 = arith.constant 6 : index
    %c0_44 = arith.constant 0 : index
    %c0_45 = arith.constant 0 : index
    %97 = vector.load %arg7[%c6, %c0_44, %c0_45] : memref<9x128x128xbf16, #tpu.memory_space<vmem>>, vector<1x128x128xbf16>
    %98 = vector.shape_cast %97 : vector<1x128x128xbf16> to vector<128x128xbf16>
    %cst_46 = arith.constant dense<0.000000e+00> : vector<8x128xf32>
    %99 = tpu.matmul %96, %98, %cst_46 {dimension_numbers = #tpu.dot_dimension_numbers<[1], [0], [0], [1], [0, 0, 1, 1], [], []>} : vector<8x128xbf16>, vector<128x128xbf16>, vector<8x128xf32> -> vector<8x128xf32>
    %100 = arith.addf %95, %99 : vector<8x128xf32>
    %101 = vector.extract_strided_slice %64 {offsets = [7, 0], sizes = [8, 128], strides = [1, 1]} : vector<16x128xbf16> to vector<8x128xbf16>
    %c7 = arith.constant 7 : index
    %c0_47 = arith.constant 0 : index
    %c0_48 = arith.constant 0 : index
    %102 = vector.load %arg7[%c7, %c0_47, %c0_48] : memref<9x128x128xbf16, #tpu.memory_space<vmem>>, vector<1x128x128xbf16>
    %103 = vector.shape_cast %102 : vector<1x128x128xbf16> to vector<128x128xbf16>
    %cst_49 = arith.constant dense<0.000000e+00> : vector<8x128xf32>
    %104 = tpu.matmul %101, %103, %cst_49 {dimension_numbers = #tpu.dot_dimension_numbers<[1], [0], [0], [1], [0, 0, 1, 1], [], []>} : vector<8x128xbf16>, vector<128x128xbf16>, vector<8x128xf32> -> vector<8x128xf32>
    %105 = arith.addf %100, %104 : vector<8x128xf32>
    %106 = vector.extract_strided_slice %64 {offsets = [8, 0], sizes = [8, 128], strides = [1, 1]} : vector<16x128xbf16> to vector<8x128xbf16>
    %c8 = arith.constant 8 : index
    %c0_50 = arith.constant 0 : index
    %c0_51 = arith.constant 0 : index
    %107 = vector.load %arg7[%c8, %c0_50, %c0_51] : memref<9x128x128xbf16, #tpu.memory_space<vmem>>, vector<1x128x128xbf16>
    %108 = vector.shape_cast %107 : vector<1x128x128xbf16> to vector<128x128xbf16>
    %cst_52 = arith.constant dense<0.000000e+00> : vector<8x128xf32>
    %109 = tpu.matmul %106, %108, %cst_52 {dimension_numbers = #tpu.dot_dimension_numbers<[1], [0], [0], [1], [0, 0, 1, 1], [], []>} : vector<8x128xbf16>, vector<128x128xbf16>, vector<8x128xf32> -> vector<8x128xf32>
    %110 = arith.addf %105, %109 : vector<8x128xf32>
    %c0_53 = arith.constant 0 : index
    %c0_54 = arith.constant 0 : index
    %111 = vector.load %arg8[%c0_53, %c0_54] : memref<1x128xf32, #tpu.memory_space<vmem>>, vector<1x128xf32>
    %112 = vector.broadcast %111 : vector<1x128xf32> to vector<8x128xf32>
    %113 = arith.addf %110, %112 : vector<8x128xf32>
    %c0_55 = arith.constant 0 : index
    %c0_56 = arith.constant 0 : index
    %114 = vector.load %arg19[%c0_55, %c0_56] : memref<8x128xf32, #tpu.memory_space<vmem>>, vector<8x128xf32>
    tpu.vector_store %arg19[%c0_55, %c0_56], %23 {strides = array<i32>} : memref<8x128xf32, #tpu.memory_space<vmem>>, vector<8x128xf32>,
    %115 = arith.truncf %113 : vector<8x128xf32> to vector<8x128xbf16>
    %c0_57 = arith.constant 0 : index
    %c0_58 = arith.constant 0 : index
    %116 = vector.load %arg9[%c0_57, %c0_58] : memref<128x256xbf16, #tpu.memory_space<vmem>>, vector<128x256xbf16>
    %cst_59 = arith.constant dense<0.000000e+00> : vector<8x256xf32>
    %117 = tpu.matmul %115, %116, %cst_59 {dimension_numbers = #tpu.dot_dimension_numbers<[1], [0], [0], [1], [0, 0, 1, 1], [], []>} : vector<8x128xbf16>, vector<128x256xbf16>, vector<8x256xf32> -> vector<8x256xf32>
    %c0_60 = arith.constant 0 : index
    %c0_61 = arith.constant 0 : index
    %118 = vector.load %arg10[%c0_60, %c0_61] : memref<1x256xf32, #tpu.memory_space<vmem>>, vector<1x256xf32>
    %119 = vector.broadcast %118 : vector<1x256xf32> to vector<8x256xf32>
    %120 = arith.addf %117, %119 : vector<8x256xf32>
    %cst_62 = arith.constant 0.000000e+00 : f32
    %121 = vector.broadcast %cst_62 : f32 to vector<8x256xf32>
    %122 = arith.subf %121, %120 : vector<8x256xf32>
    %123 = math.exp %122 : vector<8x256xf32>
    %cst_63 = arith.constant 1.000000e+00 : f32
    %124 = vector.broadcast %cst_63 : f32 to vector<8x256xf32>
    %125 = arith.addf %124, %123 : vector<8x256xf32>
    %126 = tpu.reciprocal %125 {approx = true} : vector<8x256xf32> -> vector<8x256xf32>
    %127 = vector.extract_strided_slice %126 {offsets = [0, 0], sizes = [8, 128], strides = [1, 1]} : vector<8x256xf32> to vector<8x128xf32>
    %128 = vector.extract_strided_slice %126 {offsets = [0, 128], sizes = [8, 128], strides = [1, 1]} : vector<8x256xf32> to vector<8x128xf32>
    %c0_64 = arith.constant 0 : index
    %c0_65 = arith.constant 0 : index
    %129 = vector.load %arg11[%c0_64, %c0_65] : memref<1x128xf32, #tpu.memory_space<vmem>>, vector<1x128xf32>
    %130 = vector.broadcast %129 : vector<1x128xf32> to vector<8x128xf32>
    %131 = arith.mulf %128, %130 : vector<8x128xf32>
    %132 = math.exp %131 : vector<8x128xf32>
    %133 = arith.mulf %132, %132 : vector<8x128xf32>
    %cst_66 = arith.constant 1.000000e+00 : f32
    %134 = vector.broadcast %cst_66 : f32 to vector<8x128xf32>
    %135 = arith.subf %134, %133 : vector<8x128xf32>
    %cst_67 = arith.constant 0.000000e+00 : f32
    %136 = vector.broadcast %cst_67 : f32 to vector<8x128xf32>
    %137 = arith.maximumf %135, %136 : vector<8x128xf32>
    %138 = math.sqrt %137 : vector<8x128xf32>
    %139 = arith.mulf %138, %127 : vector<8x128xf32>
    %140 = arith.mulf %139, %113 : vector<8x128xf32>
    %141 = tpu.iota {dimensions = array<i32: 0>} : vector<8x128xi32>
    %c1_i32_68 = arith.constant 1 : i32
    %142 = vector.broadcast %c1_i32_68 : i32 to vector<8x128xi32>
    %143 = arith.cmpi sge, %141, %142 : vector<8x128xi32>
    %c1_i32_69 = arith.constant 1 : i32
    %144 = tpu.dynamic_rotate %132 by %c1_i32_69 dim 0 : vector<8x128xf32>, i32 -> vector<8x128xf32>
    %cst_70 = arith.constant 1.000000e+00 : f32
    %145 = vector.broadcast %cst_70 : f32 to vector<8x128xf32>
    %146 = arith.select %143, %144, %145 : vector<8x128xi1>, vector<8x128xf32>
    %c1_i32_71 = arith.constant 1 : i32
    %147 = tpu.dynamic_rotate %140 by %c1_i32_71 dim 0 : vector<8x128xf32>, i32 -> vector<8x128xf32>
    %cst_72 = arith.constant 0.000000e+00 : f32
    %148 = vector.broadcast %cst_72 : f32 to vector<8x128xf32>
    %149 = arith.select %143, %147, %148 : vector<8x128xi1>, vector<8x128xf32>
    %150 = arith.mulf %132, %149 : vector<8x128xf32>
    %151 = arith.addf %150, %140 : vector<8x128xf32>
    %152 = arith.mulf %146, %132 : vector<8x128xf32>
    %c2_i32 = arith.constant 2 : i32
    %153 = vector.broadcast %c2_i32 : i32 to vector<8x128xi32>
    %154 = arith.cmpi sge, %141, %153 : vector<8x128xi32>
    %c2_i32_73 = arith.constant 2 : i32
    %155 = tpu.dynamic_rotate %152 by %c2_i32_73 dim 0 : vector<8x128xf32>, i32 -> vector<8x128xf32>
    %cst_74 = arith.constant 1.000000e+00 : f32
    %156 = vector.broadcast %cst_74 : f32 to vector<8x128xf32>
    %157 = arith.select %154, %155, %156 : vector<8x128xi1>, vector<8x128xf32>
    %c2_i32_75 = arith.constant 2 : i32
    %158 = tpu.dynamic_rotate %151 by %c2_i32_75 dim 0 : vector<8x128xf32>, i32 -> vector<8x128xf32>
    %cst_76 = arith.constant 0.000000e+00 : f32
    %159 = vector.broadcast %cst_76 : f32 to vector<8x128xf32>
    %160 = arith.select %154, %158, %159 : vector<8x128xi1>, vector<8x128xf32>
    %161 = arith.mulf %152, %160 : vector<8x128xf32>
    %162 = arith.addf %161, %151 : vector<8x128xf32>
    %163 = arith.mulf %157, %152 : vector<8x128xf32>
    %c4_i32 = arith.constant 4 : i32
    %164 = vector.broadcast %c4_i32 : i32 to vector<8x128xi32>
    %165 = arith.cmpi sge, %141, %164 : vector<8x128xi32>
    %c4_i32_77 = arith.constant 4 : i32
    %166 = tpu.dynamic_rotate %163 by %c4_i32_77 dim 0 : vector<8x128xf32>, i32 -> vector<8x128xf32>
    %cst_78 = arith.constant 1.000000e+00 : f32
    %167 = vector.broadcast %cst_78 : f32 to vector<8x128xf32>
    %168 = arith.select %165, %166, %167 : vector<8x128xi1>, vector<8x128xf32>
    %c4_i32_79 = arith.constant 4 : i32
    %169 = tpu.dynamic_rotate %162 by %c4_i32_79 dim 0 : vector<8x128xf32>, i32 -> vector<8x128xf32>
    %cst_80 = arith.constant 0.000000e+00 : f32
    %170 = vector.broadcast %cst_80 : f32 to vector<8x128xf32>
    %171 = arith.select %165, %169, %170 : vector<8x128xi1>, vector<8x128xf32>
    %172 = arith.mulf %163, %171 : vector<8x128xf32>
    %173 = arith.addf %172, %162 : vector<8x128xf32>
    %174 = arith.mulf %168, %163 : vector<8x128xf32>
    %c0_81 = arith.constant 0 : index
    %c0_82 = arith.constant 0 : index
    %175 = vector.load %arg20[%c0_81, %c0_82] : memref<1x128xf32, #tpu.memory_space<vmem>>, vector<1x128xf32>
    %176 = vector.broadcast %175 : vector<1x128xf32> to vector<8x128xf32>
    %177 = arith.mulf %174, %176 : vector<8x128xf32>
    %178 = arith.addf %177, %173 : vector<8x128xf32>
    %179 = vector.extract_strided_slice %178 {offsets = [7, 0], sizes = [1, 128], strides = [1, 1]} : vector<8x128xf32> to vector<1x128xf32>
    %c0_83 = arith.constant 0 : index
    %c0_84 = arith.constant 0 : index
    %180 = vector.load %arg20[%c0_83, %c0_84] : memref<1x128xf32, #tpu.memory_space<vmem>>, vector<1x128xf32>
    tpu.vector_store %arg20[%c0_83, %c0_84], %179 {strides = array<i32>} : memref<1x128xf32, #tpu.memory_space<vmem>>, vector<1x128xf32>,
    %181 = vector.extract_strided_slice %178 {offsets = [7, 0], sizes = [1, 128], strides = [1, 1]} : vector<8x128xf32> to vector<1x128xf32>
    %182 = vector.shape_cast %181 : vector<1x128xf32> to vector<1x1x128xf32>
    %c0_85 = arith.constant 0 : index
    %c0_86 = arith.constant 0 : index
    %c0_87 = arith.constant 0 : index
    %183 = vector.load %arg18[%c0_85, %c0_86, %c0_87] : memref<1x1x128xf32, #tpu.memory_space<vmem>>, vector<1x1x128xf32>
    tpu.vector_store %arg18[%c0_85, %c0_86, %c0_87], %182 {strides = array<i32>} : memref<1x1x128xf32, #tpu.memory_space<vmem>>, vector<1x1x128xf32>,
    %184 = arith.mulf %178, %37 : vector<8x128xf32>
    %185 = arith.addf %184, %7 : vector<8x128xf32>
    %186 = arith.mulf %185, %185 : vector<8x128xf32>
    %cst_88 = arith.constant dense<0.000000e+00> : vector<8xf32>
    %187 = vector.multi_reduction <add>, %186, %cst_88 [1] : vector<8x128xf32> to vector<8xf32>
    %188 = vector.shape_cast %187 : vector<8xf32> to vector<8x1xf32>
    %189 = math.sqrt %188 : vector<8x1xf32>
    %cst_89 = arith.constant 9.99999997E-7 : f32
    %190 = vector.broadcast %cst_89 : f32 to vector<8x1xf32>
    %191 = arith.addf %189, %190 : vector<8x1xf32>
    %192 = tpu.reciprocal %191 {approx = true} : vector<8x1xf32> -> vector<8x1xf32>
    %193 = vector.broadcast %192 : vector<8x1xf32> to vector<8x128xf32>
    %194 = arith.mulf %185, %193 : vector<8x128xf32>
    %195 = vector.broadcast %3 : vector<1x128xf32> to vector<8x128xf32>
    %196 = arith.mulf %194, %195 : vector<8x128xf32>
    %197 = arith.truncf %196 : vector<8x128xf32> to vector<8x128xbf16>
    %c0_90 = arith.constant 0 : index
    %c0_91 = arith.constant 0 : index
    %198 = vector.load %arg13[%c0_90, %c0_91] : memref<128x128xbf16, #tpu.memory_space<vmem>>, vector<128x128xbf16>
    %cst_92 = arith.constant dense<0.000000e+00> : vector<8x128xf32>
    %199 = tpu.matmul %197, %198, %cst_92 {dimension_numbers = #tpu.dot_dimension_numbers<[1], [0], [0], [1], [0, 0, 1, 1], [], []>} : vector<8x128xbf16>, vector<128x128xbf16>, vector<8x128xf32> -> vector<8x128xf32>
    %c0_93 = arith.constant 0 : index
    %c0_94 = arith.constant 0 : index
    %200 = vector.load %arg14[%c0_93, %c0_94] : memref<1x128xf32, #tpu.memory_space<vmem>>, vector<1x128xf32>
    %201 = vector.broadcast %200 : vector<1x128xf32> to vector<8x128xf32>
    %202 = arith.addf %199, %201 : vector<8x128xf32>
    %cst_95 = arith.constant 5.000000e-01 : f32
    %203 = vector.broadcast %cst_95 : f32 to vector<8x128xf32>
    %204 = arith.mulf %203, %202 : vector<8x128xf32>
    %cst_96 = arith.constant 4.471500e-02 : f32
    %205 = vector.broadcast %cst_96 : f32 to vector<8x128xf32>
    %206 = arith.mulf %205, %202 : vector<8x128xf32>
    %207 = arith.mulf %206, %202 : vector<8x128xf32>
    %208 = arith.mulf %207, %202 : vector<8x128xf32>
    %209 = arith.addf %202, %208 : vector<8x128xf32>
    %cst_97 = arith.constant 0.797884583 : f32
    %210 = vector.broadcast %cst_97 : f32 to vector<8x128xf32>
    %211 = arith.mulf %210, %209 : vector<8x128xf32>
    %212 = math.tanh %211 : vector<8x128xf32>
    %cst_98 = arith.constant 1.000000e+00 : f32
    %213 = vector.broadcast %cst_98 : f32 to vector<8x128xf32>
    %214 = arith.addf %213, %212 : vector<8x128xf32>
    %215 = arith.mulf %204, %214 : vector<8x128xf32>
    %216 = arith.mulf %215, %202 : vector<8x128xf32>
    %217 = arith.truncf %216 : vector<8x128xf32> to vector<8x128xbf16>
    %c0_99 = arith.constant 0 : index
    %c0_100 = arith.constant 0 : index
    %218 = vector.load %arg15[%c0_99, %c0_100] : memref<128x128xbf16, #tpu.memory_space<vmem>>, vector<128x128xbf16>
    %cst_101 = arith.constant dense<0.000000e+00> : vector<8x128xf32>
    %219 = tpu.matmul %217, %218, %cst_101 {dimension_numbers = #tpu.dot_dimension_numbers<[1], [0], [0], [1], [0, 0, 1, 1], [], []>} : vector<8x128xbf16>, vector<128x128xbf16>, vector<8x128xf32> -> vector<8x128xf32>
    %c0_102 = arith.constant 0 : index
    %c0_103 = arith.constant 0 : index
    %220 = vector.load %arg16[%c0_102, %c0_103] : memref<1x128xf32, #tpu.memory_space<vmem>>, vector<1x128xf32>
    %221 = vector.broadcast %220 : vector<1x128xf32> to vector<8x128xf32>
    %222 = arith.addf %219, %221 : vector<8x128xf32>
    %223 = arith.addf %185, %222 : vector<8x128xf32>
    %224 = vector.shape_cast %223 : vector<8x128xf32> to vector<1x8x128xf32>
    %c0_104 = arith.constant 0 : index
    %c0_105 = arith.constant 0 : index
    %c0_106 = arith.constant 0 : index
    %225 = vector.load %arg17[%c0_104, %c0_105, %c0_106] : memref<1x8x128xf32, #tpu.memory_space<vmem>>, vector<1x8x128xf32>
    tpu.vector_store %arg17[%c0_104, %c0_105, %c0_106], %224 {strides = array<i32>} : memref<1x8x128xf32, #tpu.memory_space<vmem>>, vector<1x8x128xf32>,
    return
  }
  func.func @transform_0(%arg0: i32, %arg1: i32) -> (i32, i32, i32) {
    %c0_i32 = arith.constant 0 : i32
    %c0_i32_0 = arith.constant 0 : i32
    return %arg0, %arg1, %c0_i32 : i32, i32, i32
  }
  func.func @transform_1(%arg0: i32, %arg1: i32) -> (i32, i32, i32) {
    %c1_i32 = arith.constant 1 : i32
    %0 = arith.addi %arg1, %c1_i32 : i32
    %c1_i32_0 = arith.constant 1 : i32
    %1 = arith.muli %0, %c1_i32_0 : i32
    %c1_i32_1 = arith.constant 1 : i32
    %2 = arith.minsi %1, %c1_i32_1 : i32
    %c0_i32 = arith.constant 0 : i32
    %c0_i32_2 = arith.constant 0 : i32
    return %arg0, %2, %c0_i32 : i32, i32, i32
  }
  func.func @transform_2(%arg0: i32, %arg1: i32) -> (i32, i32) {
    %c0_i32 = arith.constant 0 : i32
    %c0_i32_0 = arith.constant 0 : i32
    %c0_i32_1 = arith.constant 0 : i32
    return %c0_i32, %c0_i32_0 : i32, i32
  }
  func.func @transform_3(%arg0: i32, %arg1: i32) -> (i32, i32) {
    %c0_i32 = arith.constant 0 : i32
    %c0_i32_0 = arith.constant 0 : i32
    %c0_i32_1 = arith.constant 0 : i32
    return %c0_i32, %c0_i32_0 : i32, i32
  }
  func.func @transform_4(%arg0: i32, %arg1: i32) -> (i32, i32) {
    %c0_i32 = arith.constant 0 : i32
    %c0_i32_0 = arith.constant 0 : i32
    %c0_i32_1 = arith.constant 0 : i32
    return %c0_i32, %c0_i32_0 : i32, i32
  }
  func.func @transform_5(%arg0: i32, %arg1: i32) -> (i32, i32, i32) {
    %c0_i32 = arith.constant 0 : i32
    %c0_i32_0 = arith.constant 0 : i32
    %c0_i32_1 = arith.constant 0 : i32
    %c0_i32_2 = arith.constant 0 : i32
    return %c0_i32, %c0_i32_0, %c0_i32_1 : i32, i32, i32
  }
  func.func @transform_6(%arg0: i32, %arg1: i32) -> (i32, i32) {
    %c0_i32 = arith.constant 0 : i32
    %c0_i32_0 = arith.constant 0 : i32
    %c0_i32_1 = arith.constant 0 : i32
    return %c0_i32, %c0_i32_0 : i32, i32
  }
  func.func @transform_7(%arg0: i32, %arg1: i32) -> (i32, i32) {
    %c0_i32 = arith.constant 0 : i32
    %c0_i32_0 = arith.constant 0 : i32
    %c0_i32_1 = arith.constant 0 : i32
    return %c0_i32, %c0_i32_0 : i32, i32
  }
  func.func @transform_8(%arg0: i32, %arg1: i32) -> (i32, i32) {
    %c0_i32 = arith.constant 0 : i32
    %c0_i32_0 = arith.constant 0 : i32
    %c0_i32_1 = arith.constant 0 : i32
    return %c0_i32, %c0_i32_0 : i32, i32
  }
  func.func @transform_9(%arg0: i32, %arg1: i32) -> (i32, i32) {
    %c0_i32 = arith.constant 0 : i32
    %c0_i32_0 = arith.constant 0 : i32
    %c0_i32_1 = arith.constant 0 : i32
    return %c0_i32, %c0_i32_0 : i32, i32
  }
  func.func @transform_10(%arg0: i32, %arg1: i32) -> (i32, i32, i32) {
    %c0_i32 = arith.constant 0 : i32
    %c0_i32_0 = arith.constant 0 : i32
    %c0_i32_1 = arith.constant 0 : i32
    return %arg0, %c0_i32, %c0_i32_0 : i32, i32, i32
  }
  func.func @transform_11(%arg0: i32, %arg1: i32) -> (i32, i32) {
    %c0_i32 = arith.constant 0 : i32
    %c0_i32_0 = arith.constant 0 : i32
    %c0_i32_1 = arith.constant 0 : i32
    return %c0_i32, %c0_i32_0 : i32, i32
  }
  func.func @transform_12(%arg0: i32, %arg1: i32) -> (i32, i32) {
    %c0_i32 = arith.constant 0 : i32
    %c0_i32_0 = arith.constant 0 : i32
    %c0_i32_1 = arith.constant 0 : i32
    return %c0_i32, %c0_i32_0 : i32, i32
  }
  func.func @transform_13(%arg0: i32, %arg1: i32) -> (i32, i32) {
    %c0_i32 = arith.constant 0 : i32
    %c0_i32_0 = arith.constant 0 : i32
    %c0_i32_1 = arith.constant 0 : i32
    return %c0_i32, %c0_i32_0 : i32, i32
  }
  func.func @transform_14(%arg0: i32, %arg1: i32) -> (i32, i32) {
    %c0_i32 = arith.constant 0 : i32
    %c0_i32_0 = arith.constant 0 : i32
    %c0_i32_1 = arith.constant 0 : i32
    return %c0_i32, %c0_i32_0 : i32, i32
  }
  func.func @transform_15(%arg0: i32, %arg1: i32) -> (i32, i32, i32) {
    %c0_i32 = arith.constant 0 : i32
    %c0_i32_0 = arith.constant 0 : i32
    return %arg0, %arg1, %c0_i32 : i32, i32, i32
  }
  func.func @transform_16(%arg0: i32, %arg1: i32) -> (i32, i32, i32) {
    %c0_i32 = arith.constant 0 : i32
    %c0_i32_0 = arith.constant 0 : i32
    %c0_i32_1 = arith.constant 0 : i32
    return %arg0, %c0_i32, %c0_i32_0 : i32, i32, i32
  }
}

</mosaic_0001>

<llo_original>
// kernel: tpu_custom_call.1
$region0: #{tpu_custom_call.1}
  #allocation0 [shape = 'u32[]', space=smem, size = 0x4, offset = 0x4, fixed_abs, tag = 'smem constant byte address 0x4 - core index']
  #allocation1 [shape = 'u32[144,128]{1,0:T(1,128)}', space=vmem, size = 0x12000, scoped, tag = 'internal scratch']
  #allocation2 [shape = 'f32[8,128]{1,0:T(8,128)}', space=vmem, size = 0x1000, scoped, tag = 'scratch operand']
  #allocation3 [shape = 'f32[1,128]{1,0:T(1,128)}', space=vmem, size = 0x200, scoped, tag = 'scratch operand']
  %s0 = inlined_call_operand.hbm [shape: f32[2,16,128], index: 0, kind: input, shape index: {}]
  %s1 = inlined_call_operand.hbm [shape: f32[2,16,128], index: 1, kind: input, shape index: {}]
  %s2 = inlined_call_operand.vmem [shape: f32[1,128], index: 2, kind: input, shape index: {}]
  %s3 = inlined_call_operand.hbm [shape: bf16[128,256], index: 3, kind: input, shape index: {}]
  %s4 = inlined_call_operand.vmem [shape: f32[1,256], index: 4, kind: input, shape index: {}]
  %s5 = inlined_call_operand.hbm [shape: bf16[9,128,128], index: 5, kind: input, shape index: {}]
  %s6 = inlined_call_operand.vmem [shape: f32[1,128], index: 6, kind: input, shape index: {}]
  %s7 = inlined_call_operand.hbm [shape: bf16[128,256], index: 7, kind: input, shape index: {}]
  %s8 = inlined_call_operand.vmem [shape: f32[1,256], index: 8, kind: input, shape index: {}]
  %s9 = inlined_call_operand.vmem [shape: f32[1,128], index: 9, kind: input, shape index: {}]
  %s10 = inlined_call_operand.vmem [shape: f32[2,1,128], index: 10, kind: input, shape index: {}]
  %s11 = inlined_call_operand.hbm [shape: bf16[128,128], index: 11, kind: input, shape index: {}]
  %s12 = inlined_call_operand.vmem [shape: f32[1,128], index: 12, kind: input, shape index: {}]
  %s13 = inlined_call_operand.hbm [shape: bf16[128,128], index: 13, kind: input, shape index: {}]
  %s14 = inlined_call_operand.vmem [shape: f32[1,128], index: 14, kind: input, shape index: {}]
  %s15 = inlined_call_operand.hbm [shape: f32[2,16,128], index: 15, kind: output, shape index: {0}]
  %s16 = inlined_call_operand.hbm [shape: f32[2,1,128], index: 16, kind: output, shape index: {1}]
  %17 = xla_tuple %s15, %s16
  %s18 = sld [smem:[#allocation0]]
  $region133: #{tpu_custom_call.1} parent=0
    _
  %s20 = ssub.s32 1, %s18
  %s21 = scalar_select 0, %s20, %s18
  $region1: #{tpu_custom_call.1} parent=0
    #allocation4 [shape = 'u8[8192]{0}', space=vmem, size = 0x2000, scoped, tag = 'input window, operand 0']
    #allocation5 [shape = 's32[2]{0}', space=sflag, size = 0x8, scoped, tag = 'scoped memory for tpu_custom_call.1']
    #allocation6 [shape = 's32[2]{0}', space=sflag, size = 0x8, scoped, tag = 'scoped memory for tpu_custom_call.1']
    #allocation7 [shape = 'u8[8192]{0}', space=vmem, size = 0x2000, scoped, tag = 'input window, operand 1']
    #allocation8 [shape = 's32[2]{0}', space=sflag, size = 0x8, scoped, tag = 'scoped memory for tpu_custom_call.1']
    #allocation9 [shape = 'u8[65536]{0}', space=vmem, size = 0x10000, scoped, tag = 'input window, operand 3, single buffered']
    #allocation10 [shape = 'u8[294912]{0}', space=vmem, size = 0x48000, scoped, tag = 'input window, operand 5, single buffered']
    #allocation11 [shape = 's32[1]{0}', space=sflag, size = 0x4, scoped, tag = 'scoped memory for tpu_custom_call.1']
    #allocation12 [shape = 'u8[65536]{0}', space=vmem, size = 0x10000, scoped, tag = 'input window, operand 7, single buffered']
    #allocation13 [shape = 'u8[32768]{0}', space=vmem, size = 0x8000, scoped, tag = 'input window, operand 11, single buffered']
    #allocation14 [shape = 's32[1]{0}', space=sflag, size = 0x4, scoped, tag = 'scoped memory for tpu_custom_call.1']
    #allocation15 [shape = 'u8[32768]{0}', space=vmem, size = 0x8000, scoped, tag = 'input window, operand 13, single buffered']
    #allocation16 [shape = 'u8[8192]{0}', space=vmem, size = 0x2000, scoped, tag = 'output window, operand 0']
    #allocation17 [shape = 'u8[1024]{0}', space=vmem, size = 0x400, scoped, tag = 'output window, operand 1']
    #allocation18 [shape = 's32[2]{0}', space=sflag, size = 0x8, scoped, tag = 'scoped memory for tpu_custom_call.1']
    %22 = vsyncpa [#allocation5], 0
    %s23 = scalar_lea.sflag [#allocation5], 1
    %24 = vsyncpa %s23, 0
    %25 = vsyncpa [#allocation8], 0
    %s26 = scalar_lea.sflag [#allocation8], 1
    %27 = vsyncpa %s26, 0
    %28 = vsyncpa [#allocation11], 0
    %29 = vsyncpa [#allocation14], 0
    %30 = vsyncpa [#allocation6], 0
    %s31 = scalar_lea.sflag [#allocation6], 1
    %32 = vsyncpa %s31, 0
    %33 = vsyncpa [#allocation18], 0
    %s34 = scalar_lea.sflag [#allocation18], 1
    %35 = vsyncpa %s34, 0
    loop: start=0, step=1, limit=6
    $region2: #{tpu_custom_call.1} parent=1 // loop_pre_header
      _
    $region3: #{tpu_custom_call.1} parent=1 // loop_header
      %s37 = sphi 0, %s41
      %p38 = scmp.ge.s32.totalorder %s37, 6
      %s44 = sphi 0, %s56
      %s45 = sphi 0, %s52
      %s46 = sphi 0, %s44
      %s47 = sphi 0, %s45
      %s48 = sphi 0, %s46
      %s49 = sphi 0, %s47
      %s61 = sphi 0, %s63
      %s64 = sphi 0, %s61
      %s65 = sphi 0, %s64
      %s81 = sphi 0, %s65
      %s95 = sphi 0, %s97
      %s98 = sphi 0, %s95
      %s99 = sphi 0, %s98
      %s115 = sphi 0, %s99
      %s119 = sphi 0, %s119
      %s121 = sphi 0, %s119
      %s122 = sphi 0, %s121
      %s136 = sphi 0, %s122
      %s140 = sphi 0, %s140
      %s142 = sphi 0, %s140
      %s143 = sphi 0, %s142
      %s157 = sphi 0, %s143
      %s161 = sphi 0, %s161
      %s163 = sphi 0, %s161
      %s164 = sphi 0, %s163
      %s178 = sphi 0, %s164
      %s182 = sphi 0, %s182
      %s184 = sphi 0, %s182
      %s185 = sphi 0, %s184
      %s199 = sphi 0, %s185
      %s203 = sphi 0, %s203
      %s205 = sphi 0, %s203
      %s206 = sphi 0, %s205
      %s220 = sphi 0, %s206
      %s224 = sphi 0, %s224
      %s226 = sphi 0, %s224
      %s227 = sphi 0, %s226
      %s241 = sphi 0, %s227
      %s245 = sphi 0, %s245
      %s247 = sphi 0, %s245
      %s248 = sphi 0, %s247
      %s262 = sphi 0, %s248
      %s266 = sphi 0, %s266
      %s268 = sphi 0, %s266
      %s269 = sphi 0, %s268
      %s283 = sphi 0, %s269
      %s289 = sphi 0, %s291
      %s292 = sphi 0, %s289
      %s293 = sphi 0, %s292
      %s309 = sphi 0, %s293
      %s313 = sphi 0, %s313
      %s315 = sphi 0, %s313
      %s316 = sphi 0, %s315
      %s330 = sphi 0, %s316
      %s334 = sphi 0, %s334
      %s336 = sphi 0, %s334
      %s337 = sphi 0, %s336
      %s351 = sphi 0, %s337
      %s355 = sphi 0, %s355
      %s357 = sphi 0, %s355
      %s358 = sphi 0, %s357
      %s372 = sphi 0, %s358
      %s376 = sphi 0, %s376
      %s378 = sphi 0, %s376
      %s379 = sphi 0, %s378
      %s393 = sphi 0, %s379
      %s401 = sphi 0, %s403
      %s404 = sphi 0, %s401
      %s405 = sphi 0, %s404
      %s421 = sphi 0, %s405
      %s427 = sphi 0, %s429
      %s430 = sphi 0, %s427
      %s431 = sphi 0, %s430
      %s447 = sphi 0, %s431
    $region4: #{tpu_custom_call.1} parent=1 // loop_header_branch
      %40 = sbr.rel (%p38) target = $region8
    $region5: #{tpu_custom_call.1} parent=1 // loop_body
      %s42 = ssub.s32 %s37, 1
      %s43 = ssub.s32 %s37, 2
      %s50 = sadd.s32 1, %s45
      %p51 = scmp.ge.s32.totalorder %s50, 2
      %s52 = scalar_select %p51, 0, %s50
      %s53 = sadd.s32 1, %s44
      %s54 = scalar_select %p51, %s53, %s44
      %p55 = scmp.ge.s32.totalorder %s54, 2
      %s56 = scalar_select %p55, 0, %s54
      %s57 = ssub.s32 %s44, %s56
      %s58 = ssub.s32 %s45, %s52
      %s59 = sor.u32 %s57, %s58
      %p60 = scmp.eq.s32.totalorder %s59, 0
      %s62 = sadd.s32 %s61, 1
      %s63 = scalar_select %p60, %s61, %s62
      %p66 = pneg %p60
      %p67 = scmp.eq.s32.totalorder %s37, 3
      %p68 = por %p66, %p67
      %p69 = scmp.ne.s32.totalorder %s61, %s64
      %p70 = scmp.eq.s32.totalorder %s37, 0
      %p71 = por %p69, %p70
      %p72 = scmp.ne.s32.totalorder %s61, %s64
      %p73 = scmp.eq.s32.totalorder %s42, 3
      %p74 = por %p72, %p73
      %p75 = scmp.ne.s32.totalorder %s64, %s65
      %p76 = scmp.eq.s32.totalorder %s42, 0
      %p77 = por %p75, %p76
      %p78 = scmp.ne.s32.totalorder %s64, %s65
      %p79 = scmp.eq.s32.totalorder %s43, 3
      %p80 = por %p78, %p79
      %p82 = scmp.ne.s32.totalorder %s65, %s81
      %p83 = scmp.eq.s32.totalorder %s43, 0
      %p84 = por %p82, %p83
      %s85 = sadd.s32 %s45, 1
      %p86 = scmp.lt.s32.totalorder %s85, 1
      %s87 = scalar_select %p86, %s85, 1
      %s88 = sadd.s32 %s52, 1
      %p89 = scmp.lt.s32.totalorder %s88, 1
      %s90 = scalar_select %p89, %s88, 1
      %s91 = ssub.s32 %s44, %s56
      %s92 = ssub.s32 %s87, %s90
      %s93 = sor.u32 %s91, %s92
      %p94 = scmp.eq.s32.totalorder %s93, 0
      %s96 = sadd.s32 %s95, 1
      %s97 = scalar_select %p94, %s95, %s96
      %p100 = pneg %p94
      %p101 = scmp.eq.s32.totalorder %s37, 3
      %p102 = por %p100, %p101
      %p103 = scmp.ne.s32.totalorder %s95, %s98
      %p104 = scmp.eq.s32.totalorder %s37, 0
      %p105 = por %p103, %p104
      %p106 = scmp.ne.s32.totalorder %s95, %s98
      %p107 = scmp.eq.s32.totalorder %s42, 3
      %p108 = por %p106, %p107
      %p109 = scmp.ne.s32.totalorder %s98, %s99
      %p110 = scmp.eq.s32.totalorder %s42, 0
      %p111 = por %p109, %p110
      %p112 = scmp.ne.s32.totalorder %s98, %s99
      %p113 = scmp.eq.s32.totalorder %s43, 3
      %p114 = por %p112, %p113
      %p116 = scmp.ne.s32.totalorder %s99, %s115
      %p117 = scmp.eq.s32.totalorder %s43, 0
      %p118 = por %p116, %p117
      %s120 = sadd.s32 %s119, 1
      %p123 = scmp.eq.s32.totalorder %s37, 3
      %p124 = scmp.ne.s32.totalorder %s119, %s121
      %p125 = scmp.eq.s32.totalorder %s37, 0
      %p126 = por %p124, %p125
      %p127 = scmp.ne.s32.totalorder %s119, %s121
      %p128 = scmp.eq.s32.totalorder %s42, 3
      %p129 = por %p127, %p128
      %p130 = scmp.ne.s32.totalorder %s121, %s122
      %p131 = scmp.eq.s32.totalorder %s42, 0
      %p132 = por %p130, %p131
      %p133 = scmp.ne.s32.totalorder %s121, %s122
      %p134 = scmp.eq.s32.totalorder %s43, 3
      %p135 = por %p133, %p134
      %p137 = scmp.ne.s32.totalorder %s122, %s136
      %p138 = scmp.eq.s32.totalorder %s43, 0
      %p139 = por %p137, %p138
      %s141 = sadd.s32 %s140, 1
      %p144 = scmp.eq.s32.totalorder %s37, 3
      %p145 = scmp.ne.s32.totalorder %s140, %s142
      %p146 = scmp.eq.s32.totalorder %s37, 0
      %p147 = por %p145, %p146
      %p148 = scmp.ne.s32.totalorder %s140, %s142
      %p149 = scmp.eq.s32.totalorder %s42, 3
      %p150 = por %p148, %p149
      %p151 = scmp.ne.s32.totalorder %s142, %s143
      %p152 = scmp.eq.s32.totalorder %s42, 0
      %p153 = por %p151, %p152
      %p154 = scmp.ne.s32.totalorder %s142, %s143
      %p155 = scmp.eq.s32.totalorder %s43, 3
      %p156 = por %p154, %p155
      %p158 = scmp.ne.s32.totalorder %s143, %s157
      %p159 = scmp.eq.s32.totalorder %s43, 0
      %p160 = por %p158, %p159
      %s162 = sadd.s32 %s161, 1
      %p165 = scmp.eq.s32.totalorder %s37, 3
      %p166 = scmp.ne.s32.totalorder %s161, %s163
      %p167 = scmp.eq.s32.totalorder %s37, 0
      %p168 = por %p166, %p167
      %p169 = scmp.ne.s32.totalorder %s161, %s163
      %p170 = scmp.eq.s32.totalorder %s42, 3
      %p171 = por %p169, %p170
      %p172 = scmp.ne.s32.totalorder %s163, %s164
      %p173 = scmp.eq.s32.totalorder %s42, 0
      %p174 = por %p172, %p173
      %p175 = scmp.ne.s32.totalorder %s163, %s164
      %p176 = scmp.eq.s32.totalorder %s43, 3
      %p177 = por %p175, %p176
      %p179 = scmp.ne.s32.totalorder %s164, %s178
      %p180 = scmp.eq.s32.totalorder %s43, 0
      %p181 = por %p179, %p180
      %s183 = sadd.s32 %s182, 1
      %p186 = scmp.eq.s32.totalorder %s37, 3
      %p187 = scmp.ne.s32.totalorder %s182, %s184
      %p188 = scmp.eq.s32.totalorder %s37, 0
      %p189 = por %p187, %p188
      %p190 = scmp.ne.s32.totalorder %s182, %s184
      %p191 = scmp.eq.s32.totalorder %s42, 3
      %p192 = por %p190, %p191
      %p193 = scmp.ne.s32.totalorder %s184, %s185
      %p194 = scmp.eq.s32.totalorder %s42, 0
      %p195 = por %p193, %p194
      %p196 = scmp.ne.s32.totalorder %s184, %s185
      %p197 = scmp.eq.s32.totalorder %s43, 3
      %p198 = por %p196, %p197
      %p200 = scmp.ne.s32.totalorder %s185, %s199
      %p201 = scmp.eq.s32.totalorder %s43, 0
      %p202 = por %p200, %p201
      %s204 = sadd.s32 %s203, 1
      %p207 = scmp.eq.s32.totalorder %s37, 3
      %p208 = scmp.ne.s32.totalorder %s203, %s205
      %p209 = scmp.eq.s32.totalorder %s37, 0
      %p210 = por %p208, %p209
      %p211 = scmp.ne.s32.totalorder %s203, %s205
      %p212 = scmp.eq.s32.totalorder %s42, 3
      %p213 = por %p211, %p212
      %p214 = scmp.ne.s32.totalorder %s205, %s206
      %p215 = scmp.eq.s32.totalorder %s42, 0
      %p216 = por %p214, %p215
      %p217 = scmp.ne.s32.totalorder %s205, %s206
      %p218 = scmp.eq.s32.totalorder %s43, 3
      %p219 = por %p217, %p218
      %p221 = scmp.ne.s32.totalorder %s206, %s220
      %p222 = scmp.eq.s32.totalorder %s43, 0
      %p223 = por %p221, %p222
      %s225 = sadd.s32 %s224, 1
      %p228 = scmp.eq.s32.totalorder %s37, 3
      %p229 = scmp.ne.s32.totalorder %s224, %s226
      %p230 = scmp.eq.s32.totalorder %s37, 0
      %p231 = por %p229, %p230
      %p232 = scmp.ne.s32.totalorder %s224, %s226
      %p233 = scmp.eq.s32.totalorder %s42, 3
      %p234 = por %p232, %p233
      %p235 = scmp.ne.s32.totalorder %s226, %s227
      %p236 = scmp.eq.s32.totalorder %s42, 0
      %p237 = por %p235, %p236
      %p238 = scmp.ne.s32.totalorder %s226, %s227
      %p239 = scmp.eq.s32.totalorder %s43, 3
      %p240 = por %p238, %p239
      %p242 = scmp.ne.s32.totalorder %s227, %s241
      %p243 = scmp.eq.s32.totalorder %s43, 0
      %p244 = por %p242, %p243
      %s246 = sadd.s32 %s245, 1
      %p249 = scmp.eq.s32.totalorder %s37, 3
      %p250 = scmp.ne.s32.totalorder %s245, %s247
      %p251 = scmp.eq.s32.totalorder %s37, 0
      %p252 = por %p250, %p251
      %p253 = scmp.ne.s32.totalorder %s245, %s247
      %p254 = scmp.eq.s32.totalorder %s42, 3
      %p255 = por %p253, %p254
      %p256 = scmp.ne.s32.totalorder %s247, %s248
      %p257 = scmp.eq.s32.totalorder %s42, 0
      %p258 = por %p256, %p257
      %p259 = scmp.ne.s32.totalorder %s247, %s248
      %p260 = scmp.eq.s32.totalorder %s43, 3
      %p261 = por %p259, %p260
      %p263 = scmp.ne.s32.totalorder %s248, %s262
      %p264 = scmp.eq.s32.totalorder %s43, 0
      %p265 = por %p263, %p264
      %s267 = sadd.s32 %s266, 1
      %p270 = scmp.eq.s32.totalorder %s37, 3
      %p271 = scmp.ne.s32.totalorder %s266, %s268
      %p272 = scmp.eq.s32.totalorder %s37, 0
      %p273 = por %p271, %p272
      %p274 = scmp.ne.s32.totalorder %s266, %s268
      %p275 = scmp.eq.s32.totalorder %s42, 3
      %p276 = por %p274, %p275
      %p277 = scmp.ne.s32.totalorder %s268, %s269
      %p278 = scmp.eq.s32.totalorder %s42, 0
      %p279 = por %p277, %p278
      %p280 = scmp.ne.s32.totalorder %s268, %s269
      %p281 = scmp.eq.s32.totalorder %s43, 3
      %p282 = por %p280, %p281
      %p284 = scmp.ne.s32.totalorder %s269, %s283
      %p285 = scmp.eq.s32.totalorder %s43, 0
      %p286 = por %p284, %p285
      %s287 = ssub.s32 %s44, %s56
      %p288 = scmp.eq.s32.totalorder %s287, 0
      %s290 = sadd.s32 %s289, 1
      %s291 = scalar_select %p288, %s289, %s290
      %p294 = pneg %p288
      %p295 = scmp.eq.s32.totalorder %s37, 3
      %p296 = por %p294, %p295
      %p297 = scmp.ne.s32.totalorder %s289, %s292
      %p298 = scmp.eq.s32.totalorder %s37, 0
      %p299 = por %p297, %p298
      %p300 = scmp.ne.s32.totalorder %s289, %s292
      %p301 = scmp.eq.s32.totalorder %s42, 3
      %p302 = por %p300, %p301
      %p303 = scmp.ne.s32.totalorder %s292, %s293
      %p304 = scmp.eq.s32.totalorder %s42, 0
      %p305 = por %p303, %p304
      %p306 = scmp.ne.s32.totalorder %s292, %s293
      %p307 = scmp.eq.s32.totalorder %s43, 3
      %p308 = por %p306, %p307
      %p310 = scmp.ne.s32.totalorder %s293, %s309
      %p311 = scmp.eq.s32.totalorder %s43, 0
      %p312 = por %p310, %p311
      %s314 = sadd.s32 %s313, 1
      %p317 = scmp.eq.s32.totalorder %s37, 3
      %p318 = scmp.ne.s32.totalorder %s313, %s315
      %p319 = scmp.eq.s32.totalorder %s37, 0
      %p320 = por %p318, %p319
      %p321 = scmp.ne.s32.totalorder %s313, %s315
      %p322 = scmp.eq.s32.totalorder %s42, 3
      %p323 = por %p321, %p322
      %p324 = scmp.ne.s32.totalorder %s315, %s316
      %p325 = scmp.eq.s32.totalorder %s42, 0
      %p326 = por %p324, %p325
      %p327 = scmp.ne.s32.totalorder %s315, %s316
      %p328 = scmp.eq.s32.totalorder %s43, 3
      %p329 = por %p327, %p328
      %p331 = scmp.ne.s32.totalorder %s316, %s330
      %p332 = scmp.eq.s32.totalorder %s43, 0
      %p333 = por %p331, %p332
      %s335 = sadd.s32 %s334, 1
      %p338 = scmp.eq.s32.totalorder %s37, 3
      %p339 = scmp.ne.s32.totalorder %s334, %s336
      %p340 = scmp.eq.s32.totalorder %s37, 0
      %p341 = por %p339, %p340
      %p342 = scmp.ne.s32.totalorder %s334, %s336
      %p343 = scmp.eq.s32.totalorder %s42, 3
      %p344 = por %p342, %p343
      %p345 = scmp.ne.s32.totalorder %s336, %s337
      %p346 = scmp.eq.s32.totalorder %s42, 0
      %p347 = por %p345, %p346
      %p348 = scmp.ne.s32.totalorder %s336, %s337
      %p349 = scmp.eq.s32.totalorder %s43, 3
      %p350 = por %p348, %p349
      %p352 = scmp.ne.s32.totalorder %s337, %s351
      %p353 = scmp.eq.s32.totalorder %s43, 0
      %p354 = por %p352, %p353
      %s356 = sadd.s32 %s355, 1
      %p359 = scmp.eq.s32.totalorder %s37, 3
      %p360 = scmp.ne.s32.totalorder %s355, %s357
      %p361 = scmp.eq.s32.totalorder %s37, 0
      %p362 = por %p360, %p361
      %p363 = scmp.ne.s32.totalorder %s355, %s357
      %p364 = scmp.eq.s32.totalorder %s42, 3
      %p365 = por %p363, %p364
      %p366 = scmp.ne.s32.totalorder %s357, %s358
      %p367 = scmp.eq.s32.totalorder %s42, 0
      %p368 = por %p366, %p367
      %p369 = scmp.ne.s32.totalorder %s357, %s358
      %p370 = scmp.eq.s32.totalorder %s43, 3
      %p371 = por %p369, %p370
      %p373 = scmp.ne.s32.totalorder %s358, %s372
      %p374 = scmp.eq.s32.totalorder %s43, 0
      %p375 = por %p373, %p374
      %s377 = sadd.s32 %s376, 1
      %p380 = scmp.eq.s32.totalorder %s37, 3
      %p381 = scmp.ne.s32.totalorder %s376, %s378
      %p382 = scmp.eq.s32.totalorder %s37, 0
      %p383 = por %p381, %p382
      %p384 = scmp.ne.s32.totalorder %s376, %s378
      %p385 = scmp.eq.s32.totalorder %s42, 3
      %p386 = por %p384, %p385
      %p387 = scmp.ne.s32.totalorder %s378, %s379
      %p388 = scmp.eq.s32.totalorder %s42, 0
      %p389 = por %p387, %p388
      %p390 = scmp.ne.s32.totalorder %s378, %s379
      %p391 = scmp.eq.s32.totalorder %s43, 3
      %p392 = por %p390, %p391
      %p394 = scmp.ne.s32.totalorder %s379, %s393
      %p395 = scmp.eq.s32.totalorder %s43, 0
      %p396 = por %p394, %p395
      %s397 = ssub.s32 %s44, %s56
      %s398 = ssub.s32 %s45, %s52
      %s399 = sor.u32 %s397, %s398
      %p400 = scmp.eq.s32.totalorder %s399, 0
      %s402 = sadd.s32 %s401, 1
      %s403 = scalar_select %p400, %s401, %s402
      %p406 = pneg %p400
      %p407 = scmp.eq.s32.totalorder %s37, 3
      %p408 = por %p406, %p407
      %p409 = scmp.ne.s32.totalorder %s401, %s404
      %p410 = scmp.eq.s32.totalorder %s37, 0
      %p411 = por %p409, %p410
      %p412 = scmp.ne.s32.totalorder %s401, %s404
      %p413 = scmp.eq.s32.totalorder %s42, 3
      %p414 = por %p412, %p413
      %p415 = scmp.ne.s32.totalorder %s404, %s405
      %p416 = scmp.eq.s32.totalorder %s42, 0
      %p417 = por %p415, %p416
      %p418 = scmp.ne.s32.totalorder %s404, %s405
      %p419 = scmp.eq.s32.totalorder %s43, 3
      %p420 = por %p418, %p419
      %p422 = scmp.ne.s32.totalorder %s405, %s421
      %p423 = scmp.eq.s32.totalorder %s43, 0
      %p424 = por %p422, %p423
      %s425 = ssub.s32 %s44, %s56
      %p426 = scmp.eq.s32.totalorder %s425, 0
      %s428 = sadd.s32 %s427, 1
      %s429 = scalar_select %p426, %s427, %s428
      %p432 = pneg %p426
      %p433 = scmp.eq.s32.totalorder %s37, 3
      %p434 = por %p432, %p433
      %p435 = scmp.ne.s32.totalorder %s427, %s430
      %p436 = scmp.eq.s32.totalorder %s37, 0
      %p437 = por %p435, %p436
      %p438 = scmp.ne.s32.totalorder %s427, %s430
      %p439 = scmp.eq.s32.totalorder %s42, 3
      %p440 = por %p438, %p439
      %p441 = scmp.ne.s32.totalorder %s430, %s431
      %p442 = scmp.eq.s32.totalorder %s42, 0
      %p443 = por %p441, %p442
      %p444 = scmp.ne.s32.totalorder %s430, %s431
      %p445 = scmp.eq.s32.totalorder %s43, 3
      %p446 = por %p444, %p445
      %p448 = scmp.ne.s32.totalorder %s431, %s447
      %p449 = scmp.eq.s32.totalorder %s43, 0
      %p450 = por %p448, %p449
      %p451 = scmp.le.s32.totalorder 1, %s37
      %p452 = scmp.lt.s32.totalorder %s37, 5
      %p453 = pnand %p451, %p452
      %p454 = pneg %p453
      // Predicated region
      $region9: #{tpu_custom_call.1} parent=5 // pred_check
        _
      $region10: #{tpu_custom_call.1} parent=5 // pred_check_branch
        %456 = sbr.rel (%p453) target = $region12
      $region11: #{tpu_custom_call.1} parent=5 // pred_region
        %s457 = ssub.s32 %s37, 1
        // Predicated region
        $region13: #{tpu_custom_call.1} parent=11 // pred_check
          %p458 = pneg %p132
        $region14: #{tpu_custom_call.1} parent=11 // pred_check_branch
          %460 = sbr.rel (%p458) target = $region16
        $region15: #{tpu_custom_call.1} parent=11 // pred_region
          _
        $region16: #{tpu_custom_call.1} parent=11 // pred_fallthru
          _
        // Predicated region
        $region17: #{tpu_custom_call.1} parent=11 // pred_check
          %p461 = pneg %p153
        $region18: #{tpu_custom_call.1} parent=11 // pred_check_branch
          %463 = sbr.rel (%p461) target = $region20
        $region19: #{tpu_custom_call.1} parent=11 // pred_region
          %s465 = ssub.s32 2048, 2048
          %466 = vsyncadd [#allocation8], %s465
          %s467 = sshll.u32 [#allocation9], 4
          %s468 = int_to_ptr.vmem [resolvable:$true] %s467
          %473 = dma.hbm_to_vmem [thread:$0]  %s3, 2048, %s468, [#allocation8], 128, 128, 8
        $region20: #{tpu_custom_call.1} parent=11 // pred_fallthru
          _
        // Predicated region
        $region21: #{tpu_custom_call.1} parent=11 // pred_check
          %p474 = pneg %p174
        $region22: #{tpu_custom_call.1} parent=11 // pred_check_branch
          %476 = sbr.rel (%p474) target = $region24
        $region23: #{tpu_custom_call.1} parent=11 // pred_region
          _
        $region24: #{tpu_custom_call.1} parent=11 // pred_fallthru
          _
        // Predicated region
        $region25: #{tpu_custom_call.1} parent=11 // pred_check
          %p477 = pneg %p195
        $region26: #{tpu_custom_call.1} parent=11 // pred_check_branch
          %479 = sbr.rel (%p477) target = $region28
        $region27: #{tpu_custom_call.1} parent=11 // pred_region
          %s481 = ssub.s32 9216, 9216
          %482 = vsyncadd [#allocation11], %s481
          %s483 = sshll.u32 [#allocation10], 4
          %s484 = int_to_ptr.vmem [resolvable:$true] %s483
          %489 = dma.hbm_to_vmem [thread:$0]  %s5, 9216, %s484, [#allocation11], 64, 64, 4
        $region28: #{tpu_custom_call.1} parent=11 // pred_fallthru
          _
        // Predicated region
        $region29: #{tpu_custom_call.1} parent=11 // pred_check
          %p490 = pneg %p216
        $region30: #{tpu_custom_call.1} parent=11 // pred_check_branch
          %492 = sbr.rel (%p490) target = $region32
        $region31: #{tpu_custom_call.1} parent=11 // pred_region
          _
        $region32: #{tpu_custom_call.1} parent=11 // pred_fallthru
          _
        // Predicated region
        $region33: #{tpu_custom_call.1} parent=11 // pred_check
          %p493 = pneg %p237
        $region34: #{tpu_custom_call.1} parent=11 // pred_check_branch
          %495 = sbr.rel (%p493) target = $region36
        $region35: #{tpu_custom_call.1} parent=11 // pred_region
          %s497 = ssub.s32 2048, 2048
          %498 = vsyncadd [#allocation11], %s497
          %s499 = sshll.u32 [#allocation12], 4
          %s500 = int_to_ptr.vmem [resolvable:$true] %s499
          %505 = dma.hbm_to_vmem [thread:$0]  %s7, 2048, %s500, [#allocation11], 128, 128, 8
        $region36: #{tpu_custom_call.1} parent=11 // pred_fallthru
          _
        // Predicated region
        $region37: #{tpu_custom_call.1} parent=11 // pred_check
          %p506 = pneg %p258
        $region38: #{tpu_custom_call.1} parent=11 // pred_check_branch
          %508 = sbr.rel (%p506) target = $region40
        $region39: #{tpu_custom_call.1} parent=11 // pred_region
          _
        $region40: #{tpu_custom_call.1} parent=11 // pred_fallthru
          _
        // Predicated region
        $region41: #{tpu_custom_call.1} parent=11 // pred_check
          %p509 = pneg %p279
        $region42: #{tpu_custom_call.1} parent=11 // pred_check_branch
          %511 = sbr.rel (%p509) target = $region44
        $region43: #{tpu_custom_call.1} parent=11 // pred_region
          _
        $region44: #{tpu_custom_call.1} parent=11 // pred_fallthru
          _
        // Predicated region
        $region45: #{tpu_custom_call.1} parent=11 // pred_check
          %p512 = pneg %p326
        $region46: #{tpu_custom_call.1} parent=11 // pred_check_branch
          %514 = sbr.rel (%p512) target = $region48
        $region47: #{tpu_custom_call.1} parent=11 // pred_region
          %s516 = ssub.s32 1024, 1024
          %517 = vsyncadd [#allocation14], %s516
          %s518 = sshll.u32 [#allocation13], 4
          %s519 = int_to_ptr.vmem [resolvable:$true] %s518
          %524 = dma.hbm_to_vmem [thread:$0]  %s11, 1024, %s519, [#allocation14], 64, 64, 4
        $region48: #{tpu_custom_call.1} parent=11 // pred_fallthru
          _
        // Predicated region
        $region49: #{tpu_custom_call.1} parent=11 // pred_check
          %p525 = pneg %p347
        $region50: #{tpu_custom_call.1} parent=11 // pred_check_branch
          %527 = sbr.rel (%p525) target = $region52
        $region51: #{tpu_custom_call.1} parent=11 // pred_region
          _
        $region52: #{tpu_custom_call.1} parent=11 // pred_fallthru
          _
        // Predicated region
        $region53: #{tpu_custom_call.1} parent=11 // pred_check
          %p528 = pneg %p368
        $region54: #{tpu_custom_call.1} parent=11 // pred_check_branch
          %530 = sbr.rel (%p528) target = $region56
        $region55: #{tpu_custom_call.1} parent=11 // pred_region
          %s532 = ssub.s32 1024, 1024
          %533 = vsyncadd [#allocation14], %s532
          %s534 = sshll.u32 [#allocation15], 4
          %s535 = int_to_ptr.vmem [resolvable:$true] %s534
          %540 = dma.hbm_to_vmem [thread:$0]  %s13, 1024, %s535, [#allocation14], 64, 64, 4
        $region56: #{tpu_custom_call.1} parent=11 // pred_fallthru
          _
        // Predicated region
        $region57: #{tpu_custom_call.1} parent=11 // pred_check
          %p541 = pneg %p389
        $region58: #{tpu_custom_call.1} parent=11 // pred_check_branch
          %543 = sbr.rel (%p541) target = $region60
        $region59: #{tpu_custom_call.1} parent=11 // pred_region
          _
        $region60: #{tpu_custom_call.1} parent=11 // pred_fallthru
          _
      $region12: #{tpu_custom_call.1} parent=5 // pred_fallthru
        _
      %p544 = scmp.lt.s32.totalorder %s37, 4
      // Predicated region
      $region61: #{tpu_custom_call.1} parent=5 // pred_check
        %p545 = pneg %p544
      $region62: #{tpu_custom_call.1} parent=5 // pred_check_branch
        %547 = sbr.rel (%p545) target = $region64
      $region63: #{tpu_custom_call.1} parent=5 // pred_region
        // Predicated region
        $region65: #{tpu_custom_call.1} parent=63 // pred_check
          %p548 = pneg %p71
        $region66: #{tpu_custom_call.1} parent=63 // pred_check_branch
          %550 = sbr.rel (%p548) target = $region68
        $region67: #{tpu_custom_call.1} parent=63 // pred_region
          %s551 = sand.u32 %s61, 1
          %s552 = scalar_lea.sflag [#allocation5], %s551
          %s553 = sand.u32 %s61, 1
          %s554 = smul.addr %s553, 8
          %s555 = scalar_lea.vmem [#allocation4], %s554
          %s557 = ssub.s32 128, 128
          %558 = vsyncadd %s552, %s557
          %s559 = smul.addr %s44, 2
          %s560 = sadd.s32 %s45, %s559
          %s561 = smul.addr %s560, 128
          %s562 = scalar_lea.hbm %s0, %s561
          %s564 = sshll.u32 %s555, 4
          %s565 = int_to_ptr.vmem [resolvable:$true] %s564
          %567 = dma.hbm_to_vmem [thread:$0]  %s562, 128, %s565, %s552
        $region68: #{tpu_custom_call.1} parent=63 // pred_fallthru
          _
        // Predicated region
        $region69: #{tpu_custom_call.1} parent=63 // pred_check
          %p568 = pneg %p105
        $region70: #{tpu_custom_call.1} parent=63 // pred_check_branch
          %570 = sbr.rel (%p568) target = $region72
        $region71: #{tpu_custom_call.1} parent=63 // pred_region
          %s571 = sand.u32 %s37, 1
          %s572 = scalar_lea.sflag [#allocation8], %s571
          %s573 = sand.u32 %s95, 1
          %s574 = smul.addr %s573, 8
          %s575 = scalar_lea.vmem [#allocation7], %s574
          %s576 = sadd.s32 %s45, 1
          %p577 = scmp.lt.s32.totalorder %s576, 1
          %s578 = scalar_select %p577, %s576, 1
          %s580 = ssub.s32 128, 128
          %581 = vsyncadd %s572, %s580
          %s582 = smul.addr %s44, 2
          %s583 = sadd.s32 %s578, %s582
          %s584 = smul.addr %s583, 128
          %s585 = scalar_lea.hbm %s1, %s584
          %s587 = sshll.u32 %s575, 4
          %s588 = int_to_ptr.vmem [resolvable:$true] %s587
          %590 = dma.hbm_to_vmem [thread:$0]  %s585, 128, %s588, %s572
        $region72: #{tpu_custom_call.1} parent=63 // pred_fallthru
          _
        // Predicated region
        $region73: #{tpu_custom_call.1} parent=63 // pred_check
          %p591 = pneg %p299
        $region74: #{tpu_custom_call.1} parent=63 // pred_check_branch
          %593 = sbr.rel (%p591) target = $region76
        $region75: #{tpu_custom_call.1} parent=63 // pred_region
          %p594 = scmp.lt.s32.totalorder %s44, 1
          %s595 = scalar_select %p594, %s44, 1
          %s596 = scalar_lea.vmem %s10, %s595
        $region76: #{tpu_custom_call.1} parent=63 // pred_fallthru
          _
      $region64: #{tpu_custom_call.1} parent=5 // pred_fallthru
        _
      %p597 = scmp.le.s32.totalorder 1, %s37
      %p598 = scmp.lt.s32.totalorder %s37, 5
      %p599 = pnand %p597, %p598
      %p600 = pneg %p599
      // Predicated region
      $region77: #{tpu_custom_call.1} parent=5 // pred_check
        _
      $region78: #{tpu_custom_call.1} parent=5 // pred_check_branch
        %602 = sbr.rel (%p599) target = $region80
      $region79: #{tpu_custom_call.1} parent=5 // pred_region
        %s603 = ssub.s32 %s37, 1
        %s604 = sand.u32 %s64, 1
        %s605 = scalar_lea.sflag [#allocation5], %s604
        %s606 = sand.u32 %s64, 1
        %s607 = smul.addr %s606, 8
        %s608 = scalar_lea.vmem [#allocation4], %s607
        // Predicated region
        $region81: #{tpu_custom_call.1} parent=79 // pred_check
          %p609 = pneg %p77
        $region82: #{tpu_custom_call.1} parent=79 // pred_check_branch
          %611 = sbr.rel (%p609) target = $region84
        $region83: #{tpu_custom_call.1} parent=79 // pred_region
          %612 = dma.done %s605, 128
        $region84: #{tpu_custom_call.1} parent=79 // pred_fallthru
          _
        %s613 = sand.u32 %s42, 1
        %s614 = scalar_lea.sflag [#allocation8], %s613
        %s615 = sand.u32 %s98, 1
        %s616 = smul.addr %s615, 8
        %s617 = scalar_lea.vmem [#allocation7], %s616
        // Predicated region
        $region85: #{tpu_custom_call.1} parent=79 // pred_check
          %p618 = pneg %p111
        $region86: #{tpu_custom_call.1} parent=79 // pred_check_branch
          %620 = sbr.rel (%p618) target = $region88
        $region87: #{tpu_custom_call.1} parent=79 // pred_region
          %621 = dma.done %s614, 128
        $region88: #{tpu_custom_call.1} parent=79 // pred_fallthru
          _
        // Predicated region
        $region89: #{tpu_custom_call.1} parent=79 // pred_check
          %p622 = pneg %p153
        $region90: #{tpu_custom_call.1} parent=79 // pred_check_branch
          %624 = sbr.rel (%p622) target = $region92
        $region91: #{tpu_custom_call.1} parent=79 // pred_region
          %625 = dma.done [#allocation8], 2048
        $region92: #{tpu_custom_call.1} parent=79 // pred_fallthru
          _
        // Predicated region
        $region93: #{tpu_custom_call.1} parent=79 // pred_check
          %p626 = pneg %p195
        $region94: #{tpu_custom_call.1} parent=79 // pred_check_branch
          %628 = sbr.rel (%p626) target = $region96
        $region95: #{tpu_custom_call.1} parent=79 // pred_region
          %629 = dma.done [#allocation11], 9216
        $region96: #{tpu_custom_call.1} parent=79 // pred_fallthru
          _
        // Predicated region
        $region97: #{tpu_custom_call.1} parent=79 // pred_check
          %p630 = pneg %p237
        $region98: #{tpu_custom_call.1} parent=79 // pred_check_branch
          %632 = sbr.rel (%p630) target = $region100
        $region99: #{tpu_custom_call.1} parent=79 // pred_region
          %633 = dma.done [#allocation11], 2048
        $region100: #{tpu_custom_call.1} parent=79 // pred_fallthru
          _
        // Predicated region
        $region101: #{tpu_custom_call.1} parent=79 // pred_check
          %p634 = pneg %p326
        $region102: #{tpu_custom_call.1} parent=79 // pred_check_branch
          %636 = sbr.rel (%p634) target = $region104
        $region103: #{tpu_custom_call.1} parent=79 // pred_region
          %637 = dma.done [#allocation14], 1024
        $region104: #{tpu_custom_call.1} parent=79 // pred_fallthru
          _
        // Predicated region
        $region105: #{tpu_custom_call.1} parent=79 // pred_check
          %p638 = pneg %p368
        $region106: #{tpu_custom_call.1} parent=79 // pred_check_branch
          %640 = sbr.rel (%p638) target = $region108
        $region107: #{tpu_custom_call.1} parent=79 // pred_region
          %641 = dma.done [#allocation14], 1024
        $region108: #{tpu_custom_call.1} parent=79 // pred_fallthru
          _
        %s642 = sand.u32 %s64, 1
        %s643 = scalar_lea.sflag [#allocation5], %s642
        %s644 = sand.u32 %s64, 1
        %s645 = smul.addr %s644, 8
        %s646 = scalar_lea.vmem [#allocation4], %s645
        %p647 = pneg %p77
        %p648 = pneg %p74
        %s649 = sand.u32 %s42, 1
        %s650 = scalar_lea.sflag [#allocation8], %s649
        %s651 = sand.u32 %s98, 1
        %s652 = smul.addr %s651, 8
        %s653 = scalar_lea.vmem [#allocation7], %s652
        %p654 = pneg %p111
        %p655 = pneg %p108
        %p656 = pneg %p132
        %p657 = pneg %p129
        %p658 = pneg %p153
        %p659 = pneg %p150
        %p660 = pneg %p174
        %p661 = pneg %p171
        %p662 = pneg %p195
        %p663 = pneg %p192
        %p664 = pneg %p216
        %p665 = pneg %p213
        %p666 = pneg %p237
        %p667 = pneg %p234
        %p668 = pneg %p258
        %p669 = pneg %p255
        %p670 = pneg %p279
        %p671 = pneg %p276
        %p672 = scmp.lt.s32.totalorder %s46, 1
        %s673 = scalar_select %p672, %s46, 1
        %s674 = scalar_lea.vmem %s10, %s673
        %p675 = pneg %p305
        %p676 = pneg %p302
        %p677 = pneg %p326
        %p678 = pneg %p323
        %p679 = pneg %p347
        %p680 = pneg %p344
        %p681 = pneg %p368
        %p682 = pneg %p365
        %p683 = pneg %p389
        %p684 = pneg %p386
        %p685 = pneg %p417
        %p686 = pneg %p414
        %s687 = sand.u32 %s404, 1
        %s688 = scalar_lea.sflag [#allocation6], %s687
        %s689 = sand.u32 %s404, 1
        %s690 = smul.addr %s689, 8
        %s691 = scalar_lea.vmem [#allocation16], %s690
        %p692 = pneg %p443
        %p693 = pneg %p440
        %s694 = sand.u32 %s430, 1
        %s695 = scalar_lea.sflag [#allocation18], %s694
        %s696 = sand.u32 %s430, 1
        %s697 = scalar_lea.vmem [#allocation17], %s696
        %s698 = sadd.s32 %s47, 1
        %p699 = scmp.lt.s32.totalorder %s698, 1
        %s700 = scalar_select %p699, %s698, 1
        %p701 = scmp.lt.s32.totalorder %s46, 1
        %s702 = scalar_select %p701, %s46, 1
        %s703 = scalar_lea.vmem %s10, %s702
        %p705 = scmp.eq.s32.totalorder %s47, 0
        // Predicated region
        $region109: #{tpu_custom_call.1} parent=79 // pred_check
          %p706 = pneg %p705
        $region110: #{tpu_custom_call.1} parent=79 // pred_check_branch
          %708 = sbr.rel (%p706) target = $region112
        $region111: #{tpu_custom_call.1} parent=79 // pred_region
          %709 = vst [vmem:[#allocation2] sm:$0xff] 0.0
          %v710 = vld [vmem:[%s703] sm:$0x1]
          %711 = vst [vmem:[#allocation3] sm:$0x1] %v710
        $region112: #{tpu_custom_call.1} parent=79 // pred_fallthru
          _
        %v712 = vld [vmem:[%s2] sm:$0x1]
        %v713 = vld [vmem:[#allocation9] sm:$0xff]
        %v714 = vld [vmem:[#allocation9 + $0x8] sm:$0xff]
        %v715 = vld [vmem:[#allocation9 + $0x10] sm:$0xff]
        %v716 = vld [vmem:[#allocation9 + $0x18] sm:$0xff]
        %v717 = vld [vmem:[#allocation9 + $0x20] sm:$0xff]
        %v718 = vld [vmem:[#allocation9 + $0x28] sm:$0xff]
        %v719 = vld [vmem:[#allocation9 + $0x30] sm:$0xff]
        %v720 = vld [vmem:[#allocation9 + $0x38] sm:$0xff]
        %v721 = vld [vmem:[#allocation9 + $0x40] sm:$0xff]
        %v722 = vld [vmem:[#allocation9 + $0x48] sm:$0xff]
        %v723 = vld [vmem:[#allocation9 + $0x50] sm:$0xff]
        %v724 = vld [vmem:[#allocation9 + $0x58] sm:$0xff]
        %v725 = vld [vmem:[#allocation9 + $0x60] sm:$0xff]
        %v726 = vld [vmem:[#allocation9 + $0x68] sm:$0xff]
        %v727 = vld [vmem:[#allocation9 + $0x70] sm:$0xff]
        %v728 = vld [vmem:[#allocation9 + $0x78] sm:$0xff]
        %v729 = vld [vmem:[%s4] sm:$0x3]
        %v730 = vld [vmem:[%s608] sm:$0xff]
        %v731 = vmul.f32 %v730, %v730
        %732 = vadd.xlane.f32.xlu0 %v731
        %v733 = vpop.xlane.xlu0 %732
        %v734 = vrsqrt.pop %v733
        %v735 = vmul.f32 %v733, %v734
        %vm736 = vcmp.eq.f32.partialorder %v733, inf
        %v737 = vsel %vm736, %v733, %v735
        %vm738 = vcmp.eq.f32.partialorder %v733, 0.0
        %v739 = vand.u32 %v733, 2147483648
        %v740 = vsel %vm738, %v739, %v737
        %v741 = vadd.f32 %v740, 1e-06
        %v742 = vrcp.pop %v741
        %v743 = vmul.f32 %v730, %v742
        %v745 = vlaneseq
        %v746 = vshrl.u32 %v745, 7
        %v747 = vsub.s32 0, %v746
        %v748 = vrot.slane %v712, %v747
        %v750 = vmul.f32 %v743, %v748
        %v751 = vpack.c.bf16 %v750, %v750
        %v753 = vlaneseq
        %v754 = vshrl.u32 %v753, 7
        %v755 = vsub.s32 0, %v754
        %v756 = vrot.slane %v729, %v755
        %v757 = vlaneseq
        %v758 = vshrl.u32 %v757, 7
        %v759 = vsub.s32 1, %v758
        %v760 = vrot.slane %v729, %v759
        %v779 = vunpack.c.l.b16 %v713
        %v780 = vunpack.c.h.b16 %v713
        %v781 = vunpack.c.l.b16 %v714
        %v782 = vunpack.c.h.b16 %v714
        %v783 = vunpack.c.l.b16 %v715
        %v784 = vunpack.c.h.b16 %v715
        %v785 = vunpack.c.l.b16 %v716
        %v786 = vunpack.c.h.b16 %v716
        %v787 = vunpack.c.l.b16 %v717
        %v788 = vunpack.c.h.b16 %v717
        %v789 = vunpack.c.l.b16 %v718
        %v790 = vunpack.c.h.b16 %v718
        %v791 = vunpack.c.l.b16 %v719
        %v792 = vunpack.c.h.b16 %v719
        %v793 = vunpack.c.l.b16 %v720
        %v794 = vunpack.c.h.b16 %v720
        %v795 = vunpack.c.l.b16 %v721
        %v796 = vunpack.c.h.b16 %v721
        %v797 = vunpack.c.l.b16 %v722
        %v798 = vunpack.c.h.b16 %v722
        %v799 = vunpack.c.l.b16 %v723
        %v800 = vunpack.c.h.b16 %v723
        %v801 = vunpack.c.l.b16 %v724
        %v802 = vunpack.c.h.b16 %v724
        %v803 = vunpack.c.l.b16 %v725
        %v804 = vunpack.c.h.b16 %v725
        %v805 = vunpack.c.l.b16 %v726
        %v806 = vunpack.c.h.b16 %v726
        %v807 = vunpack.c.l.b16 %v727
        %v808 = vunpack.c.h.b16 %v727
        %v809 = vunpack.c.l.b16 %v728
        %v810 = vunpack.c.h.b16 %v728
        %v811 = vpack.c.b16 %v781, %v779
        %v812 = vpack.c.b16 %v782, %v780
        %v813 = vpack.c.b16 %v785, %v783
        %v814 = vpack.c.b16 %v786, %v784
        %v815 = vpack.c.b16 %v789, %v787
        %v816 = vpack.c.b16 %v790, %v788
        %v817 = vpack.c.b16 %v793, %v791
        %v818 = vpack.c.b16 %v794, %v792
        %v819 = vpack.c.b16 %v797, %v795
        %v820 = vpack.c.b16 %v798, %v796
        %v821 = vpack.c.b16 %v801, %v799
        %v822 = vpack.c.b16 %v802, %v800
        %v823 = vpack.c.b16 %v805, %v803
        %v824 = vpack.c.b16 %v806, %v804
        %v825 = vpack.c.b16 %v809, %v807
        %v826 = vpack.c.b16 %v810, %v808
        %843 = vmatprep.subr.bf16.mxu0 %v812
        %844 = vmatpush1.bf16.msra.mxu0 %v811
        %845 = vmatprep.subr.bf16.mxu0 %v814
        %846 = vmatpush1.bf16.msra.mxu0 %v813
        %847 = vmatprep.subr.bf16.mxu0 %v816
        %848 = vmatpush1.bf16.msra.mxu0 %v815
        %849 = vmatprep.subr.bf16.mxu0 %v818
        %850 = vmatpush1.bf16.msra.mxu0 %v817
        %851 = vmatprep.subr.bf16.mxu0 %v820
        %852 = vmatpush1.bf16.msra.mxu0 %v819
        %853 = vmatprep.subr.bf16.mxu0 %v822
        %854 = vmatpush1.bf16.msra.mxu0 %v821
        %855 = vmatprep.subr.bf16.mxu0 %v824
        %856 = vmatpush1.bf16.msra.mxu0 %v823
        %857 = vmatprep.subr.bf16.mxu0 %v826
        %858 = vmatpush1.bf16.msra.mxu0 %v825
        %859 = vmatprep.subr.bf16.mxu0 0
        %860 = vmatpush1.bf16.msra.mxu0 0
        %861 = vmatprep.subr.bf16.mxu0 0
        %862 = vmatpush1.bf16.msra.mxu0 0
        %863 = vmatprep.subr.bf16.mxu0 0
        %864 = vmatpush1.bf16.msra.mxu0 0
        %865 = vmatprep.subr.bf16.mxu0 0
        %866 = vmatpush1.bf16.msra.mxu0 0
        %867 = vmatprep.subr.bf16.mxu0 0
        %868 = vmatpush1.bf16.msra.mxu0 0
        %869 = vmatprep.subr.bf16.mxu0 0
        %870 = vmatpush1.bf16.msra.mxu0 0
        %871 = vmatprep.subr.bf16.mxu0 0
        %872 = vmatpush1.bf16.msra.mxu0 0
        %873 = vmatprep.subr.bf16.mxu0 0
        %874 = vmatpush1.bf16.msra.mxu0 0
        %875 = vmatprep.mubr.bf16.mxu0 0
        %876 = vmatmul.mubr.bf16.gmra.mrb[0].mxu0 %v751
        %v877 = vpop.f32.mrb[0].mxu0
        %v878 = vadd.f32 %v756, %v877
        %v879 = vpop.f32.mrb[0].mxu0
        %v880 = vadd.f32 %v760, %v879
        %v881 = vpop.f32.mrb[0].mxu0
        %v882 = vpop.f32.mrb[0].mxu0
        %883 = vdwg.mxu0
        %v884 = vmul.f32 %v880, 0.5
        %v885 = vmul.f32 %v880, 0.044715
        %v886 = vmul.f32 %v885, %v880
        %v887 = vmul.f32 %v886, %v880
        %v888 = vadd.f32 %v880, %v887
        %v889 = vmul.f32 %v888, 0.7978846
        %v890 = vtanh.pop %v889
        %v891 = vadd.f32 %v890, 1.0
        %v892 = vmul.f32 %v884, %v891
        %v893 = vld [vmem:[#allocation2] sm:$0xff]
        %v894 = vld [vmem:[%s617] sm:$0xff]
        %v895 = vmul.f32 %v894, %v894
        %896 = vadd.xlane.f32.xlu0 %v895
        %v897 = vpop.xlane.xlu0 %896
        %v898 = vrsqrt.pop %v897
        %v899 = vmul.f32 %v897, %v898
        %vm900 = vcmp.eq.f32.partialorder %v897, inf
        %v901 = vsel %vm900, %v897, %v899
        %vm902 = vcmp.eq.f32.partialorder %v897, 0.0
        %v903 = vand.u32 %v897, 2147483648
        %v904 = vsel %vm902, %v903, %v901
        %v905 = vadd.f32 %v904, 1e-06
        %v906 = vrcp.pop %v905
        %v907 = vmul.f32 %v894, %v906
        %v908 = vmul.f32 %v907, %v748
        %v909 = vpack.c.bf16 %v908, %v908
        %910 = vmatprep.subr.bf16.mxu0 %v812
        %911 = vmatpush1.bf16.msra.mxu0 %v811
        %912 = vmatprep.subr.bf16.mxu0 %v814
        %913 = vmatpush1.bf16.msra.mxu0 %v813
        %914 = vmatprep.subr.bf16.mxu0 %v816
        %915 = vmatpush1.bf16.msra.mxu0 %v815
        %916 = vmatprep.subr.bf16.mxu0 %v818
        %917 = vmatpush1.bf16.msra.mxu0 %v817
        %918 = vmatprep.subr.bf16.mxu0 %v820
        %919 = vmatpush1.bf16.msra.mxu0 %v819
        %920 = vmatprep.subr.bf16.mxu0 %v822
        %921 = vmatpush1.bf16.msra.mxu0 %v821
        %922 = vmatprep.subr.bf16.mxu0 %v824
        %923 = vmatpush1.bf16.msra.mxu0 %v823
        %924 = vmatprep.subr.bf16.mxu0 %v826
        %925 = vmatpush1.bf16.msra.mxu0 %v825
        %926 = vmatprep.subr.bf16.mxu0 0
        %927 = vmatpush1.bf16.msra.mxu0 0
        %928 = vmatprep.subr.bf16.mxu0 0
        %929 = vmatpush1.bf16.msra.mxu0 0
        %930 = vmatprep.subr.bf16.mxu0 0
        %931 = vmatpush1.bf16.msra.mxu0 0
        %932 = vmatprep.subr.bf16.mxu0 0
        %933 = vmatpush1.bf16.msra.mxu0 0
        %934 = vmatprep.subr.bf16.mxu0 0
        %935 = vmatpush1.bf16.msra.mxu0 0
        %936 = vmatprep.subr.bf16.mxu0 0
        %937 = vmatpush1.bf16.msra.mxu0 0
        %938 = vmatprep.subr.bf16.mxu0 0
        %939 = vmatpush1.bf16.msra.mxu0 0
        %940 = vmatprep.subr.bf16.mxu0 0
        %941 = vmatpush1.bf16.msra.mxu0 0
        %942 = vmatprep.mubr.bf16.mxu0 0
        %943 = vmatmul.mubr.bf16.gmra.mrb[0].mxu0 %v909
        %v944 = vpop.f32.mrb[0].mxu0
        %v945 = vadd.f32 0.0, %v944
        %v946 = vpop.f32.mrb[0].mxu0
        %v947 = vpop.f32.mrb[0].mxu0
        %v948 = vpop.f32.mrb[0].mxu0
        %949 = vdwg.mxu0
        %v950 = vadd.f32 %v945, %v756
        %p951 = scmp.eq.s32.totalorder %s47, 1
        %s952 = scalar_select %p951, 1, 0
        %v953 = vstv %s952
        %vm954 = vcmp.eq.s32.totalorder %v953, 1
        %v955 = vsel %vm954, 0.0, %v950
        %v957 = vrot.slane %v893, 4
        %v960 = vrot.slane %v878, 4
        %v963 = vrot.slane %v955, 4
        %vm965 = vcmask 1043456
        %v966 = vsel %vm965, %v957, %v960
        %v967 = vsel %vm965, %v960, %v963
        %v968 = vpack.c.bf16 %v967, %v966
        %v969 = vld [vmem:[#allocation10] sm:$0xf]
        %v970 = vld [vmem:[#allocation10 + $0x4] sm:$0xf]
        %v971 = vld [vmem:[#allocation10 + $0x8] sm:$0xf]
        %v972 = vld [vmem:[#allocation10 + $0xc] sm:$0xf]
        %v973 = vld [vmem:[#allocation10 + $0x10] sm:$0xf]
        %v974 = vld [vmem:[#allocation10 + $0x14] sm:$0xf]
        %v975 = vld [vmem:[#allocation10 + $0x18] sm:$0xf]
        %v976 = vld [vmem:[#allocation10 + $0x1c] sm:$0xf]
        %v977 = vld [vmem:[#allocation10 + $0x20] sm:$0xf]
        %v978 = vld [vmem:[#allocation10 + $0x24] sm:$0xf]
        %v979 = vld [vmem:[#allocation10 + $0x28] sm:$0xf]
        %v980 = vld [vmem:[#allocation10 + $0x2c] sm:$0xf]
        %v981 = vld [vmem:[#allocation10 + $0x30] sm:$0xf]
        %v982 = vld [vmem:[#allocation10 + $0x34] sm:$0xf]
        %v983 = vld [vmem:[#allocation10 + $0x38] sm:$0xf]
        %v984 = vld [vmem:[#allocation10 + $0x3c] sm:$0xf]
        %s985 = scalar_lea.vmem [#allocation10], 64
        %v986 = vld [vmem:[%s985] sm:$0xf]
        %v987 = vld [vmem:[%s985 + $0x4] sm:$0xf]
        %v988 = vld [vmem:[%s985 + $0x8] sm:$0xf]
        %v989 = vld [vmem:[%s985 + $0xc] sm:$0xf]
        %v990 = vld [vmem:[%s985 + $0x10] sm:$0xf]
        %v991 = vld [vmem:[%s985 + $0x14] sm:$0xf]
        %v992 = vld [vmem:[%s985 + $0x18] sm:$0xf]
        %v993 = vld [vmem:[%s985 + $0x1c] sm:$0xf]
        %v994 = vld [vmem:[%s985 + $0x20] sm:$0xf]
        %v995 = vld [vmem:[%s985 + $0x24] sm:$0xf]
        %v996 = vld [vmem:[%s985 + $0x28] sm:$0xf]
        %v997 = vld [vmem:[%s985 + $0x2c] sm:$0xf]
        %v998 = vld [vmem:[%s985 + $0x30] sm:$0xf]
        %v999 = vld [vmem:[%s985 + $0x34] sm:$0xf]
        %v1000 = vld [vmem:[%s985 + $0x38] sm:$0xf]
        %v1001 = vld [vmem:[%s985 + $0x3c] sm:$0xf]
        %v1003 = vshrl.u32 %v968, 16
        %v1005 = vshll.u32 %v968, 16
        %v1007 = vrot.slane %v1005, 1
        %v1008 = vor.u32 %v1003, %v1007
        %v1026 = vunpack.c.l.b16 %v986
        %v1027 = vunpack.c.l.b16 %v987
        %v1028 = vunpack.c.l.b16 %v988
        %v1029 = vunpack.c.l.b16 %v989
        %v1030 = vunpack.c.l.b16 %v990
        %v1031 = vunpack.c.l.b16 %v991
        %v1032 = vunpack.c.l.b16 %v992
        %v1033 = vunpack.c.l.b16 %v993
        %v1034 = vunpack.c.l.b16 %v994
        %v1035 = vunpack.c.l.b16 %v995
        %v1036 = vunpack.c.l.b16 %v996
        %v1037 = vunpack.c.l.b16 %v997
        %v1038 = vunpack.c.l.b16 %v998
        %v1039 = vunpack.c.l.b16 %v999
        %v1040 = vunpack.c.l.b16 %v1000
        %v1041 = vunpack.c.l.b16 %v1001
        %v1042 = vpack.c.b16 %v1027, %v1026
        %v1043 = vpack.c.b16 %v1029, %v1028
        %v1044 = vpack.c.b16 %v1031, %v1030
        %v1045 = vpack.c.b16 %v1033, %v1032
        %v1046 = vpack.c.b16 %v1035, %v1034
        %v1047 = vpack.c.b16 %v1037, %v1036
        %v1048 = vpack.c.b16 %v1039, %v1038
        %v1049 = vpack.c.b16 %v1041, %v1040
        %1058 = vmatprep.subr.bf16.mxu0 0
        %1059 = vmatpush1.bf16.msra.mxu0 %v1042
        %1060 = vmatprep.subr.bf16.mxu0 0
        %1061 = vmatpush1.bf16.msra.mxu0 %v1043
        %1062 = vmatprep.subr.bf16.mxu0 0
        %1063 = vmatpush1.bf16.msra.mxu0 %v1044
        %1064 = vmatprep.subr.bf16.mxu0 0
        %1065 = vmatpush1.bf16.msra.mxu0 %v1045
        %1066 = vmatprep.subr.bf16.mxu0 0
        %1067 = vmatpush1.bf16.msra.mxu0 %v1046
        %1068 = vmatprep.subr.bf16.mxu0 0
        %1069 = vmatpush1.bf16.msra.mxu0 %v1047
        %1070 = vmatprep.subr.bf16.mxu0 0
        %1071 = vmatpush1.bf16.msra.mxu0 %v1048
        %1072 = vmatprep.subr.bf16.mxu0 0
        %1073 = vmatpush1.bf16.msra.mxu0 %v1049
        %1074 = vmatprep.subr.bf16.mxu0 0
        %1075 = vmatpush1.bf16.msra.mxu0 0
        %1076 = vmatprep.subr.bf16.mxu0 0
        %1077 = vmatpush1.bf16.msra.mxu0 0
        %1078 = vmatprep.subr.bf16.mxu0 0
        %1079 = vmatpush1.bf16.msra.mxu0 0
        %1080 = vmatprep.subr.bf16.mxu0 0
        %1081 = vmatpush1.bf16.msra.mxu0 0
        %1082 = vmatprep.subr.bf16.mxu0 0
        %1083 = vmatpush1.bf16.msra.mxu0 0
        %1084 = vmatprep.subr.bf16.mxu0 0
        %1085 = vmatpush1.bf16.msra.mxu0 0
        %1086 = vmatprep.subr.bf16.mxu0 0
        %1087 = vmatpush1.bf16.msra.mxu0 0
        %1088 = vmatprep.subr.bf16.mxu0 0
        %1089 = vmatpush1.bf16.msra.mxu0 0
        %1090 = vmatprep.mubr.bf16.mxu0 0
        %1091 = vmatmul.mubr.bf16.gmra.mrb[0].mxu0 %v1008
        %v1092 = vpop.f32.mrb[0].mxu0
        %v1093 = vadd.f32 0.0, %v1092
        %v1094 = vpop.f32.mrb[0].mxu0
        %v1095 = vpop.f32.mrb[0].mxu0
        %v1096 = vpop.f32.mrb[0].mxu0
        %1097 = vdwg.mxu0
        %v1114 = vunpack.c.l.b16 %v969
        %v1115 = vunpack.c.l.b16 %v970
        %v1116 = vunpack.c.l.b16 %v971
        %v1117 = vunpack.c.l.b16 %v972
        %v1118 = vunpack.c.l.b16 %v973
        %v1119 = vunpack.c.l.b16 %v974
        %v1120 = vunpack.c.l.b16 %v975
        %v1121 = vunpack.c.l.b16 %v976
        %v1122 = vunpack.c.l.b16 %v977
        %v1123 = vunpack.c.l.b16 %v978
        %v1124 = vunpack.c.l.b16 %v979
        %v1125 = vunpack.c.l.b16 %v980
        %v1126 = vunpack.c.l.b16 %v981
        %v1127 = vunpack.c.l.b16 %v982
        %v1128 = vunpack.c.l.b16 %v983
        %v1129 = vunpack.c.l.b16 %v984
        %v1130 = vpack.c.b16 %v1115, %v1114
        %v1131 = vpack.c.b16 %v1117, %v1116
        %v1132 = vpack.c.b16 %v1119, %v1118
        %v1133 = vpack.c.b16 %v1121, %v1120
        %v1134 = vpack.c.b16 %v1123, %v1122
        %v1135 = vpack.c.b16 %v1125, %v1124
        %v1136 = vpack.c.b16 %v1127, %v1126
        %v1137 = vpack.c.b16 %v1129, %v1128
        %1146 = vmatprep.subr.bf16.mxu0 0
        %1147 = vmatpush1.bf16.msra.mxu0 %v1130
        %1148 = vmatprep.subr.bf16.mxu0 0
        %1149 = vmatpush1.bf16.msra.mxu0 %v1131
        %1150 = vmatprep.subr.bf16.mxu0 0
        %1151 = vmatpush1.bf16.msra.mxu0 %v1132
        %1152 = vmatprep.subr.bf16.mxu0 0
        %1153 = vmatpush1.bf16.msra.mxu0 %v1133
        %1154 = vmatprep.subr.bf16.mxu0 0
        %1155 = vmatpush1.bf16.msra.mxu0 %v1134
        %1156 = vmatprep.subr.bf16.mxu0 0
        %1157 = vmatpush1.bf16.msra.mxu0 %v1135
        %1158 = vmatprep.subr.bf16.mxu0 0
        %1159 = vmatpush1.bf16.msra.mxu0 %v1136
        %1160 = vmatprep.subr.bf16.mxu0 0
        %1161 = vmatpush1.bf16.msra.mxu0 %v1137
        %1162 = vmatprep.subr.bf16.mxu0 0
        %1163 = vmatpush1.bf16.msra.mxu0 0
        %1164 = vmatprep.subr.bf16.mxu0 0
        %1165 = vmatpush1.bf16.msra.mxu0 0
        %1166 = vmatprep.subr.bf16.mxu0 0
        %1167 = vmatpush1.bf16.msra.mxu0 0
        %1168 = vmatprep.subr.bf16.mxu0 0
        %1169 = vmatpush1.bf16.msra.mxu0 0
        %1170 = vmatprep.subr.bf16.mxu0 0
        %1171 = vmatpush1.bf16.msra.mxu0 0
        %1172 = vmatprep.subr.bf16.mxu0 0
        %1173 = vmatpush1.bf16.msra.mxu0 0
        %1174 = vmatprep.subr.bf16.mxu0 0
        %1175 = vmatpush1.bf16.msra.mxu0 0
        %1176 = vmatprep.subr.bf16.mxu0 0
        %1177 = vmatpush1.bf16.msra.mxu0 0
        %1178 = vmatprep.mubr.bf16.mxu0 0
        %1179 = vmatmul.mubr.bf16.gmra.mrb[0].mxu0 %v968
        %v1180 = vpop.f32.mrb[0].mxu0
        %v1181 = vadd.f32 %v1093, %v1180
        %v1182 = vpop.f32.mrb[0].mxu0
        %v1183 = vpop.f32.mrb[0].mxu0
        %v1184 = vpop.f32.mrb[0].mxu0
        %1185 = vdwg.mxu0
        %s1186 = scalar_lea.vmem [#allocation10], 128
        %v1187 = vld [vmem:[%s1186] sm:$0xf]
        %v1188 = vld [vmem:[%s1186 + $0x4] sm:$0xf]
        %v1189 = vld [vmem:[%s1186 + $0x8] sm:$0xf]
        %v1190 = vld [vmem:[%s1186 + $0xc] sm:$0xf]
        %v1191 = vld [vmem:[%s1186 + $0x10] sm:$0xf]
        %v1192 = vld [vmem:[%s1186 + $0x14] sm:$0xf]
        %v1193 = vld [vmem:[%s1186 + $0x18] sm:$0xf]
        %v1194 = vld [vmem:[%s1186 + $0x1c] sm:$0xf]
        %v1195 = vld [vmem:[%s1186 + $0x20] sm:$0xf]
        %v1196 = vld [vmem:[%s1186 + $0x24] sm:$0xf]
        %v1197 = vld [vmem:[%s1186 + $0x28] sm:$0xf]
        %v1198 = vld [vmem:[%s1186 + $0x2c] sm:$0xf]
        %v1199 = vld [vmem:[%s1186 + $0x30] sm:$0xf]
        %v1200 = vld [vmem:[%s1186 + $0x34] sm:$0xf]
        %v1201 = vld [vmem:[%s1186 + $0x38] sm:$0xf]
        %v1202 = vld [vmem:[%s1186 + $0x3c] sm:$0xf]
        %v1204 = vrot.slane %v968, 1
        %v1222 = vunpack.c.l.b16 %v1187
        %v1223 = vunpack.c.l.b16 %v1188
        %v1224 = vunpack.c.l.b16 %v1189
        %v1225 = vunpack.c.l.b16 %v1190
        %v1226 = vunpack.c.l.b16 %v1191
        %v1227 = vunpack.c.l.b16 %v1192
        %v1228 = vunpack.c.l.b16 %v1193
        %v1229 = vunpack.c.l.b16 %v1194
        %v1230 = vunpack.c.l.b16 %v1195
        %v1231 = vunpack.c.l.b16 %v1196
        %v1232 = vunpack.c.l.b16 %v1197
        %v1233 = vunpack.c.l.b16 %v1198
        %v1234 = vunpack.c.l.b16 %v1199
        %v1235 = vunpack.c.l.b16 %v1200
        %v1236 = vunpack.c.l.b16 %v1201
        %v1237 = vunpack.c.l.b16 %v1202
        %v1238 = vpack.c.b16 %v1223, %v1222
        %v1239 = vpack.c.b16 %v1225, %v1224
        %v1240 = vpack.c.b16 %v1227, %v1226
        %v1241 = vpack.c.b16 %v1229, %v1228
        %v1242 = vpack.c.b16 %v1231, %v1230
        %v1243 = vpack.c.b16 %v1233, %v1232
        %v1244 = vpack.c.b16 %v1235, %v1234
        %v1245 = vpack.c.b16 %v1237, %v1236
        %1254 = vmatprep.subr.bf16.mxu0 0
        %1255 = vmatpush1.bf16.msra.mxu0 %v1238
        %1256 = vmatprep.subr.bf16.mxu0 0
        %1257 = vmatpush1.bf16.msra.mxu0 %v1239
        %1258 = vmatprep.subr.bf16.mxu0 0
        %1259 = vmatpush1.bf16.msra.mxu0 %v1240
        %1260 = vmatprep.subr.bf16.mxu0 0
        %1261 = vmatpush1.bf16.msra.mxu0 %v1241
        %1262 = vmatprep.subr.bf16.mxu0 0
        %1263 = vmatpush1.bf16.msra.mxu0 %v1242
        %1264 = vmatprep.subr.bf16.mxu0 0
        %1265 = vmatpush1.bf16.msra.mxu0 %v1243
        %1266 = vmatprep.subr.bf16.mxu0 0
        %1267 = vmatpush1.bf16.msra.mxu0 %v1244
        %1268 = vmatprep.subr.bf16.mxu0 0
        %1269 = vmatpush1.bf16.msra.mxu0 %v1245
        %1270 = vmatprep.subr.bf16.mxu0 0
        %1271 = vmatpush1.bf16.msra.mxu0 0
        %1272 = vmatprep.subr.bf16.mxu0 0
        %1273 = vmatpush1.bf16.msra.mxu0 0
        %1274 = vmatprep.subr.bf16.mxu0 0
        %1275 = vmatpush1.bf16.msra.mxu0 0
        %1276 = vmatprep.subr.bf16.mxu0 0
        %1277 = vmatpush1.bf16.msra.mxu0 0
        %1278 = vmatprep.subr.bf16.mxu0 0
        %1279 = vmatpush1.bf16.msra.mxu0 0
        %1280 = vmatprep.subr.bf16.mxu0 0
        %1281 = vmatpush1.bf16.msra.mxu0 0
        %1282 = vmatprep.subr.bf16.mxu0 0
        %1283 = vmatpush1.bf16.msra.mxu0 0
        %1284 = vmatprep.subr.bf16.mxu0 0
        %1285 = vmatpush1.bf16.msra.mxu0 0
        %1286 = vmatprep.mubr.bf16.mxu0 0
        %1287 = vmatmul.mubr.bf16.gmra.mrb[0].mxu0 %v1204
        %v1288 = vpop.f32.mrb[0].mxu0
        %v1289 = vadd.f32 0.0, %v1288
        %v1290 = vpop.f32.mrb[0].mxu0
        %v1291 = vpop.f32.mrb[0].mxu0
        %v1292 = vpop.f32.mrb[0].mxu0
        %1293 = vdwg.mxu0
        %v1294 = vadd.f32 %v1181, %v1289
        %s1295 = scalar_lea.vmem [#allocation10], 192
        %v1296 = vld [vmem:[%s1295] sm:$0xf]
        %v1297 = vld [vmem:[%s1295 + $0x4] sm:$0xf]
        %v1298 = vld [vmem:[%s1295 + $0x8] sm:$0xf]
        %v1299 = vld [vmem:[%s1295 + $0xc] sm:$0xf]
        %v1300 = vld [vmem:[%s1295 + $0x10] sm:$0xf]
        %v1301 = vld [vmem:[%s1295 + $0x14] sm:$0xf]
        %v1302 = vld [vmem:[%s1295 + $0x18] sm:$0xf]
        %v1303 = vld [vmem:[%s1295 + $0x1c] sm:$0xf]
        %v1304 = vld [vmem:[%s1295 + $0x20] sm:$0xf]
        %v1305 = vld [vmem:[%s1295 + $0x24] sm:$0xf]
        %v1306 = vld [vmem:[%s1295 + $0x28] sm:$0xf]
        %v1307 = vld [vmem:[%s1295 + $0x2c] sm:$0xf]
        %v1308 = vld [vmem:[%s1295 + $0x30] sm:$0xf]
        %v1309 = vld [vmem:[%s1295 + $0x34] sm:$0xf]
        %v1310 = vld [vmem:[%s1295 + $0x38] sm:$0xf]
        %v1311 = vld [vmem:[%s1295 + $0x3c] sm:$0xf]
        %v1312 = vrot.slane %v1003, 1
        %v1313 = vrot.slane %v1005, 2
        %v1314 = vor.u32 %v1312, %v1313
        %v1332 = vunpack.c.l.b16 %v1296
        %v1333 = vunpack.c.l.b16 %v1297
        %v1334 = vunpack.c.l.b16 %v1298
        %v1335 = vunpack.c.l.b16 %v1299
        %v1336 = vunpack.c.l.b16 %v1300
        %v1337 = vunpack.c.l.b16 %v1301
        %v1338 = vunpack.c.l.b16 %v1302
        %v1339 = vunpack.c.l.b16 %v1303
        %v1340 = vunpack.c.l.b16 %v1304
        %v1341 = vunpack.c.l.b16 %v1305
        %v1342 = vunpack.c.l.b16 %v1306
        %v1343 = vunpack.c.l.b16 %v1307
        %v1344 = vunpack.c.l.b16 %v1308
        %v1345 = vunpack.c.l.b16 %v1309
        %v1346 = vunpack.c.l.b16 %v1310
        %v1347 = vunpack.c.l.b16 %v1311
        %v1348 = vpack.c.b16 %v1333, %v1332
        %v1349 = vpack.c.b16 %v1335, %v1334
        %v1350 = vpack.c.b16 %v1337, %v1336
        %v1351 = vpack.c.b16 %v1339, %v1338
        %v1352 = vpack.c.b16 %v1341, %v1340
        %v1353 = vpack.c.b16 %v1343, %v1342
        %v1354 = vpack.c.b16 %v1345, %v1344
        %v1355 = vpack.c.b16 %v1347, %v1346
        %1364 = vmatprep.subr.bf16.mxu0 0
        %1365 = vmatpush1.bf16.msra.mxu0 %v1348
        %1366 = vmatprep.subr.bf16.mxu0 0
        %1367 = vmatpush1.bf16.msra.mxu0 %v1349
        %1368 = vmatprep.subr.bf16.mxu0 0
        %1369 = vmatpush1.bf16.msra.mxu0 %v1350
        %1370 = vmatprep.subr.bf16.mxu0 0
        %1371 = vmatpush1.bf16.msra.mxu0 %v1351
        %1372 = vmatprep.subr.bf16.mxu0 0
        %1373 = vmatpush1.bf16.msra.mxu0 %v1352
        %1374 = vmatprep.subr.bf16.mxu0 0
        %1375 = vmatpush1.bf16.msra.mxu0 %v1353
        %1376 = vmatprep.subr.bf16.mxu0 0
        %1377 = vmatpush1.bf16.msra.mxu0 %v1354
        %1378 = vmatprep.subr.bf16.mxu0 0
        %1379 = vmatpush1.bf16.msra.mxu0 %v1355
        %1380 = vmatprep.subr.bf16.mxu0 0
        %1381 = vmatpush1.bf16.msra.mxu0 0
        %1382 = vmatprep.subr.bf16.mxu0 0
        %1383 = vmatpush1.bf16.msra.mxu0 0
        %1384 = vmatprep.subr.bf16.mxu0 0
        %1385 = vmatpush1.bf16.msra.mxu0 0
        %1386 = vmatprep.subr.bf16.mxu0 0
        %1387 = vmatpush1.bf16.msra.mxu0 0
        %1388 = vmatprep.subr.bf16.mxu0 0
        %1389 = vmatpush1.bf16.msra.mxu0 0
        %1390 = vmatprep.subr.bf16.mxu0 0
        %1391 = vmatpush1.bf16.msra.mxu0 0
        %1392 = vmatprep.subr.bf16.mxu0 0
        %1393 = vmatpush1.bf16.msra.mxu0 0
        %1394 = vmatprep.subr.bf16.mxu0 0
        %1395 = vmatpush1.bf16.msra.mxu0 0
        %1396 = vmatprep.mubr.bf16.mxu0 0
        %1397 = vmatmul.mubr.bf16.gmra.mrb[0].mxu0 %v1314
        %v1398 = vpop.f32.mrb[0].mxu0
        %v1399 = vadd.f32 0.0, %v1398
        %v1400 = vpop.f32.mrb[0].mxu0
        %v1401 = vpop.f32.mrb[0].mxu0
        %v1402 = vpop.f32.mrb[0].mxu0
        %1403 = vdwg.mxu0
        %v1404 = vadd.f32 %v1294, %v1399
        %s1405 = scalar_lea.vmem [#allocation10], 256
        %v1406 = vld [vmem:[%s1405] sm:$0xf]
        %v1407 = vld [vmem:[%s1405 + $0x4] sm:$0xf]
        %v1408 = vld [vmem:[%s1405 + $0x8] sm:$0xf]
        %v1409 = vld [vmem:[%s1405 + $0xc] sm:$0xf]
        %v1410 = vld [vmem:[%s1405 + $0x10] sm:$0xf]
        %v1411 = vld [vmem:[%s1405 + $0x14] sm:$0xf]
        %v1412 = vld [vmem:[%s1405 + $0x18] sm:$0xf]
        %v1413 = vld [vmem:[%s1405 + $0x1c] sm:$0xf]
        %v1414 = vld [vmem:[%s1405 + $0x20] sm:$0xf]
        %v1415 = vld [vmem:[%s1405 + $0x24] sm:$0xf]
        %v1416 = vld [vmem:[%s1405 + $0x28] sm:$0xf]
        %v1417 = vld [vmem:[%s1405 + $0x2c] sm:$0xf]
        %v1418 = vld [vmem:[%s1405 + $0x30] sm:$0xf]
        %v1419 = vld [vmem:[%s1405 + $0x34] sm:$0xf]
        %v1420 = vld [vmem:[%s1405 + $0x38] sm:$0xf]
        %v1421 = vld [vmem:[%s1405 + $0x3c] sm:$0xf]
        %v1422 = vrot.slane %v968, 2
        %v1440 = vunpack.c.l.b16 %v1406
        %v1441 = vunpack.c.l.b16 %v1407
        %v1442 = vunpack.c.l.b16 %v1408
        %v1443 = vunpack.c.l.b16 %v1409
        %v1444 = vunpack.c.l.b16 %v1410
        %v1445 = vunpack.c.l.b16 %v1411
        %v1446 = vunpack.c.l.b16 %v1412
        %v1447 = vunpack.c.l.b16 %v1413
        %v1448 = vunpack.c.l.b16 %v1414
        %v1449 = vunpack.c.l.b16 %v1415
        %v1450 = vunpack.c.l.b16 %v1416
        %v1451 = vunpack.c.l.b16 %v1417
        %v1452 = vunpack.c.l.b16 %v1418
        %v1453 = vunpack.c.l.b16 %v1419
        %v1454 = vunpack.c.l.b16 %v1420
        %v1455 = vunpack.c.l.b16 %v1421
        %v1456 = vpack.c.b16 %v1441, %v1440
        %v1457 = vpack.c.b16 %v1443, %v1442
        %v1458 = vpack.c.b16 %v1445, %v1444
        %v1459 = vpack.c.b16 %v1447, %v1446
        %v1460 = vpack.c.b16 %v1449, %v1448
        %v1461 = vpack.c.b16 %v1451, %v1450
        %v1462 = vpack.c.b16 %v1453, %v1452
        %v1463 = vpack.c.b16 %v1455, %v1454
        %1472 = vmatprep.subr.bf16.mxu0 0
        %1473 = vmatpush1.bf16.msra.mxu0 %v1456
        %1474 = vmatprep.subr.bf16.mxu0 0
        %1475 = vmatpush1.bf16.msra.mxu0 %v1457
        %1476 = vmatprep.subr.bf16.mxu0 0
        %1477 = vmatpush1.bf16.msra.mxu0 %v1458
        %1478 = vmatprep.subr.bf16.mxu0 0
        %1479 = vmatpush1.bf16.msra.mxu0 %v1459
        %1480 = vmatprep.subr.bf16.mxu0 0
        %1481 = vmatpush1.bf16.msra.mxu0 %v1460
        %1482 = vmatprep.subr.bf16.mxu0 0
        %1483 = vmatpush1.bf16.msra.mxu0 %v1461
        %1484 = vmatprep.subr.bf16.mxu0 0
        %1485 = vmatpush1.bf16.msra.mxu0 %v1462
        %1486 = vmatprep.subr.bf16.mxu0 0
        %1487 = vmatpush1.bf16.msra.mxu0 %v1463
        %1488 = vmatprep.subr.bf16.mxu0 0
        %1489 = vmatpush1.bf16.msra.mxu0 0
        %1490 = vmatprep.subr.bf16.mxu0 0
        %1491 = vmatpush1.bf16.msra.mxu0 0
        %1492 = vmatprep.subr.bf16.mxu0 0
        %1493 = vmatpush1.bf16.msra.mxu0 0
        %1494 = vmatprep.subr.bf16.mxu0 0
        %1495 = vmatpush1.bf16.msra.mxu0 0
        %1496 = vmatprep.subr.bf16.mxu0 0
        %1497 = vmatpush1.bf16.msra.mxu0 0
        %1498 = vmatprep.subr.bf16.mxu0 0
        %1499 = vmatpush1.bf16.msra.mxu0 0
        %1500 = vmatprep.subr.bf16.mxu0 0
        %1501 = vmatpush1.bf16.msra.mxu0 0
        %1502 = vmatprep.subr.bf16.mxu0 0
        %1503 = vmatpush1.bf16.msra.mxu0 0
        %1504 = vmatprep.mubr.bf16.mxu0 0
        %1505 = vmatmul.mubr.bf16.gmra.mrb[0].mxu0 %v1422
        %v1506 = vpop.f32.mrb[0].mxu0
        %v1507 = vadd.f32 0.0, %v1506
        %v1508 = vpop.f32.mrb[0].mxu0
        %v1509 = vpop.f32.mrb[0].mxu0
        %v1510 = vpop.f32.mrb[0].mxu0
        %1511 = vdwg.mxu0
        %v1512 = vadd.f32 %v1404, %v1507
        %s1513 = scalar_lea.vmem [#allocation10], 320
        %v1514 = vld [vmem:[%s1513] sm:$0xf]
        %v1515 = vld [vmem:[%s1513 + $0x4] sm:$0xf]
        %v1516 = vld [vmem:[%s1513 + $0x8] sm:$0xf]
        %v1517 = vld [vmem:[%s1513 + $0xc] sm:$0xf]
        %v1518 = vld [vmem:[%s1513 + $0x10] sm:$0xf]
        %v1519 = vld [vmem:[%s1513 + $0x14] sm:$0xf]
        %v1520 = vld [vmem:[%s1513 + $0x18] sm:$0xf]
        %v1521 = vld [vmem:[%s1513 + $0x1c] sm:$0xf]
        %v1522 = vld [vmem:[%s1513 + $0x20] sm:$0xf]
        %v1523 = vld [vmem:[%s1513 + $0x24] sm:$0xf]
        %v1524 = vld [vmem:[%s1513 + $0x28] sm:$0xf]
        %v1525 = vld [vmem:[%s1513 + $0x2c] sm:$0xf]
        %v1526 = vld [vmem:[%s1513 + $0x30] sm:$0xf]
        %v1527 = vld [vmem:[%s1513 + $0x34] sm:$0xf]
        %v1528 = vld [vmem:[%s1513 + $0x38] sm:$0xf]
        %v1529 = vld [vmem:[%s1513 + $0x3c] sm:$0xf]
        %v1530 = vrot.slane %v1003, 2
        %v1531 = vrot.slane %v1005, 3
        %v1532 = vor.u32 %v1530, %v1531
        %v1550 = vunpack.c.l.b16 %v1514
        %v1551 = vunpack.c.l.b16 %v1515
        %v1552 = vunpack.c.l.b16 %v1516
        %v1553 = vunpack.c.l.b16 %v1517
        %v1554 = vunpack.c.l.b16 %v1518
        %v1555 = vunpack.c.l.b16 %v1519
        %v1556 = vunpack.c.l.b16 %v1520
        %v1557 = vunpack.c.l.b16 %v1521
        %v1558 = vunpack.c.l.b16 %v1522
        %v1559 = vunpack.c.l.b16 %v1523
        %v1560 = vunpack.c.l.b16 %v1524
        %v1561 = vunpack.c.l.b16 %v1525
        %v1562 = vunpack.c.l.b16 %v1526
        %v1563 = vunpack.c.l.b16 %v1527
        %v1564 = vunpack.c.l.b16 %v1528
        %v1565 = vunpack.c.l.b16 %v1529
        %v1566 = vpack.c.b16 %v1551, %v1550
        %v1567 = vpack.c.b16 %v1553, %v1552
        %v1568 = vpack.c.b16 %v1555, %v1554
        %v1569 = vpack.c.b16 %v1557, %v1556
        %v1570 = vpack.c.b16 %v1559, %v1558
        %v1571 = vpack.c.b16 %v1561, %v1560
        %v1572 = vpack.c.b16 %v1563, %v1562
        %v1573 = vpack.c.b16 %v1565, %v1564
        %1582 = vmatprep.subr.bf16.mxu0 0
        %1583 = vmatpush1.bf16.msra.mxu0 %v1566
        %1584 = vmatprep.subr.bf16.mxu0 0
        %1585 = vmatpush1.bf16.msra.mxu0 %v1567
        %1586 = vmatprep.subr.bf16.mxu0 0
        %1587 = vmatpush1.bf16.msra.mxu0 %v1568
        %1588 = vmatprep.subr.bf16.mxu0 0
        %1589 = vmatpush1.bf16.msra.mxu0 %v1569
        %1590 = vmatprep.subr.bf16.mxu0 0
        %1591 = vmatpush1.bf16.msra.mxu0 %v1570
        %1592 = vmatprep.subr.bf16.mxu0 0
        %1593 = vmatpush1.bf16.msra.mxu0 %v1571
        %1594 = vmatprep.subr.bf16.mxu0 0
        %1595 = vmatpush1.bf16.msra.mxu0 %v1572
        %1596 = vmatprep.subr.bf16.mxu0 0
        %1597 = vmatpush1.bf16.msra.mxu0 %v1573
        %1598 = vmatprep.subr.bf16.mxu0 0
        %1599 = vmatpush1.bf16.msra.mxu0 0
        %1600 = vmatprep.subr.bf16.mxu0 0
        %1601 = vmatpush1.bf16.msra.mxu0 0
        %1602 = vmatprep.subr.bf16.mxu0 0
        %1603 = vmatpush1.bf16.msra.mxu0 0
        %1604 = vmatprep.subr.bf16.mxu0 0
        %1605 = vmatpush1.bf16.msra.mxu0 0
        %1606 = vmatprep.subr.bf16.mxu0 0
        %1607 = vmatpush1.bf16.msra.mxu0 0
        %1608 = vmatprep.subr.bf16.mxu0 0
        %1609 = vmatpush1.bf16.msra.mxu0 0
        %1610 = vmatprep.subr.bf16.mxu0 0
        %1611 = vmatpush1.bf16.msra.mxu0 0
        %1612 = vmatprep.subr.bf16.mxu0 0
        %1613 = vmatpush1.bf16.msra.mxu0 0
        %1614 = vmatprep.mubr.bf16.mxu0 0
        %1615 = vmatmul.mubr.bf16.gmra.mrb[0].mxu0 %v1532
        %v1616 = vpop.f32.mrb[0].mxu0
        %v1617 = vadd.f32 0.0, %v1616
        %v1618 = vpop.f32.mrb[0].mxu0
        %v1619 = vpop.f32.mrb[0].mxu0
        %v1620 = vpop.f32.mrb[0].mxu0
        %1621 = vdwg.mxu0
        %v1622 = vadd.f32 %v1512, %v1617
        %s1623 = scalar_lea.vmem [#allocation10], 384
        %v1624 = vld [vmem:[%s1623] sm:$0xf]
        %v1625 = vld [vmem:[%s1623 + $0x4] sm:$0xf]
        %v1626 = vld [vmem:[%s1623 + $0x8] sm:$0xf]
        %v1627 = vld [vmem:[%s1623 + $0xc] sm:$0xf]
        %v1628 = vld [vmem:[%s1623 + $0x10] sm:$0xf]
        %v1629 = vld [vmem:[%s1623 + $0x14] sm:$0xf]
        %v1630 = vld [vmem:[%s1623 + $0x18] sm:$0xf]
        %v1631 = vld [vmem:[%s1623 + $0x1c] sm:$0xf]
        %v1632 = vld [vmem:[%s1623 + $0x20] sm:$0xf]
        %v1633 = vld [vmem:[%s1623 + $0x24] sm:$0xf]
        %v1634 = vld [vmem:[%s1623 + $0x28] sm:$0xf]
        %v1635 = vld [vmem:[%s1623 + $0x2c] sm:$0xf]
        %v1636 = vld [vmem:[%s1623 + $0x30] sm:$0xf]
        %v1637 = vld [vmem:[%s1623 + $0x34] sm:$0xf]
        %v1638 = vld [vmem:[%s1623 + $0x38] sm:$0xf]
        %v1639 = vld [vmem:[%s1623 + $0x3c] sm:$0xf]
        %v1640 = vrot.slane %v968, 3
        %v1658 = vunpack.c.l.b16 %v1624
        %v1659 = vunpack.c.l.b16 %v1625
        %v1660 = vunpack.c.l.b16 %v1626
        %v1661 = vunpack.c.l.b16 %v1627
        %v1662 = vunpack.c.l.b16 %v1628
        %v1663 = vunpack.c.l.b16 %v1629
        %v1664 = vunpack.c.l.b16 %v1630
        %v1665 = vunpack.c.l.b16 %v1631
        %v1666 = vunpack.c.l.b16 %v1632
        %v1667 = vunpack.c.l.b16 %v1633
        %v1668 = vunpack.c.l.b16 %v1634
        %v1669 = vunpack.c.l.b16 %v1635
        %v1670 = vunpack.c.l.b16 %v1636
        %v1671 = vunpack.c.l.b16 %v1637
        %v1672 = vunpack.c.l.b16 %v1638
        %v1673 = vunpack.c.l.b16 %v1639
        %v1674 = vpack.c.b16 %v1659, %v1658
        %v1675 = vpack.c.b16 %v1661, %v1660
        %v1676 = vpack.c.b16 %v1663, %v1662
        %v1677 = vpack.c.b16 %v1665, %v1664
        %v1678 = vpack.c.b16 %v1667, %v1666
        %v1679 = vpack.c.b16 %v1669, %v1668
        %v1680 = vpack.c.b16 %v1671, %v1670
        %v1681 = vpack.c.b16 %v1673, %v1672
        %1690 = vmatprep.subr.bf16.mxu0 0
        %1691 = vmatpush1.bf16.msra.mxu0 %v1674
        %1692 = vmatprep.subr.bf16.mxu0 0
        %1693 = vmatpush1.bf16.msra.mxu0 %v1675
        %1694 = vmatprep.subr.bf16.mxu0 0
        %1695 = vmatpush1.bf16.msra.mxu0 %v1676
        %1696 = vmatprep.subr.bf16.mxu0 0
        %1697 = vmatpush1.bf16.msra.mxu0 %v1677
        %1698 = vmatprep.subr.bf16.mxu0 0
        %1699 = vmatpush1.bf16.msra.mxu0 %v1678
        %1700 = vmatprep.subr.bf16.mxu0 0
        %1701 = vmatpush1.bf16.msra.mxu0 %v1679
        %1702 = vmatprep.subr.bf16.mxu0 0
        %1703 = vmatpush1.bf16.msra.mxu0 %v1680
        %1704 = vmatprep.subr.bf16.mxu0 0
        %1705 = vmatpush1.bf16.msra.mxu0 %v1681
        %1706 = vmatprep.subr.bf16.mxu0 0
        %1707 = vmatpush1.bf16.msra.mxu0 0
        %1708 = vmatprep.subr.bf16.mxu0 0
        %1709 = vmatpush1.bf16.msra.mxu0 0
        %1710 = vmatprep.subr.bf16.mxu0 0
        %1711 = vmatpush1.bf16.msra.mxu0 0
        %1712 = vmatprep.subr.bf16.mxu0 0
        %1713 = vmatpush1.bf16.msra.mxu0 0
        %1714 = vmatprep.subr.bf16.mxu0 0
        %1715 = vmatpush1.bf16.msra.mxu0 0
        %1716 = vmatprep.subr.bf16.mxu0 0
        %1717 = vmatpush1.bf16.msra.mxu0 0
        %1718 = vmatprep.subr.bf16.mxu0 0
        %1719 = vmatpush1.bf16.msra.mxu0 0
        %1720 = vmatprep.subr.bf16.mxu0 0
        %1721 = vmatpush1.bf16.msra.mxu0 0
        %1722 = vmatprep.mubr.bf16.mxu0 0
        %1723 = vmatmul.mubr.bf16.gmra.mrb[0].mxu0 %v1640
        %v1724 = vpop.f32.mrb[0].mxu0
        %v1725 = vadd.f32 0.0, %v1724
        %v1726 = vpop.f32.mrb[0].mxu0
        %v1727 = vpop.f32.mrb[0].mxu0
        %v1728 = vpop.f32.mrb[0].mxu0
        %1729 = vdwg.mxu0
        %v1730 = vadd.f32 %v1622, %v1725
        %s1731 = scalar_lea.vmem [#allocation10], 448
        %v1732 = vld [vmem:[%s1731] sm:$0xf]
        %v1733 = vld [vmem:[%s1731 + $0x4] sm:$0xf]
        %v1734 = vld [vmem:[%s1731 + $0x8] sm:$0xf]
        %v1735 = vld [vmem:[%s1731 + $0xc] sm:$0xf]
        %v1736 = vld [vmem:[%s1731 + $0x10] sm:$0xf]
        %v1737 = vld [vmem:[%s1731 + $0x14] sm:$0xf]
        %v1738 = vld [vmem:[%s1731 + $0x18] sm:$0xf]
        %v1739 = vld [vmem:[%s1731 + $0x1c] sm:$0xf]
        %v1740 = vld [vmem:[%s1731 + $0x20] sm:$0xf]
        %v1741 = vld [vmem:[%s1731 + $0x24] sm:$0xf]
        %v1742 = vld [vmem:[%s1731 + $0x28] sm:$0xf]
        %v1743 = vld [vmem:[%s1731 + $0x2c] sm:$0xf]
        %v1744 = vld [vmem:[%s1731 + $0x30] sm:$0xf]
        %v1745 = vld [vmem:[%s1731 + $0x34] sm:$0xf]
        %v1746 = vld [vmem:[%s1731 + $0x38] sm:$0xf]
        %v1747 = vld [vmem:[%s1731 + $0x3c] sm:$0xf]
        %v1748 = vrot.slane %v1003, 3
        %v1749 = vrot.slane %v1005, 4
        %v1750 = vor.u32 %v1748, %v1749
        %v1768 = vunpack.c.l.b16 %v1732
        %v1769 = vunpack.c.l.b16 %v1733
        %v1770 = vunpack.c.l.b16 %v1734
        %v1771 = vunpack.c.l.b16 %v1735
        %v1772 = vunpack.c.l.b16 %v1736
        %v1773 = vunpack.c.l.b16 %v1737
        %v1774 = vunpack.c.l.b16 %v1738
        %v1775 = vunpack.c.l.b16 %v1739
        %v1776 = vunpack.c.l.b16 %v1740
        %v1777 = vunpack.c.l.b16 %v1741
        %v1778 = vunpack.c.l.b16 %v1742
        %v1779 = vunpack.c.l.b16 %v1743
        %v1780 = vunpack.c.l.b16 %v1744
        %v1781 = vunpack.c.l.b16 %v1745
        %v1782 = vunpack.c.l.b16 %v1746
        %v1783 = vunpack.c.l.b16 %v1747
        %v1784 = vpack.c.b16 %v1769, %v1768
        %v1785 = vpack.c.b16 %v1771, %v1770
        %v1786 = vpack.c.b16 %v1773, %v1772
        %v1787 = vpack.c.b16 %v1775, %v1774
        %v1788 = vpack.c.b16 %v1777, %v1776
        %v1789 = vpack.c.b16 %v1779, %v1778
        %v1790 = vpack.c.b16 %v1781, %v1780
        %v1791 = vpack.c.b16 %v1783, %v1782
        %1800 = vmatprep.subr.bf16.mxu0 0
        %1801 = vmatpush1.bf16.msra.mxu0 %v1784
        %1802 = vmatprep.subr.bf16.mxu0 0
        %1803 = vmatpush1.bf16.msra.mxu0 %v1785
        %1804 = vmatprep.subr.bf16.mxu0 0
        %1805 = vmatpush1.bf16.msra.mxu0 %v1786
        %1806 = vmatprep.subr.bf16.mxu0 0
        %1807 = vmatpush1.bf16.msra.mxu0 %v1787
        %1808 = vmatprep.subr.bf16.mxu0 0
        %1809 = vmatpush1.bf16.msra.mxu0 %v1788
        %1810 = vmatprep.subr.bf16.mxu0 0
        %1811 = vmatpush1.bf16.msra.mxu0 %v1789
        %1812 = vmatprep.subr.bf16.mxu0 0
        %1813 = vmatpush1.bf16.msra.mxu0 %v1790
        %1814 = vmatprep.subr.bf16.mxu0 0
        %1815 = vmatpush1.bf16.msra.mxu0 %v1791
        %1816 = vmatprep.subr.bf16.mxu0 0
        %1817 = vmatpush1.bf16.msra.mxu0 0
        %1818 = vmatprep.subr.bf16.mxu0 0
        %1819 = vmatpush1.bf16.msra.mxu0 0
        %1820 = vmatprep.subr.bf16.mxu0 0
        %1821 = vmatpush1.bf16.msra.mxu0 0
        %1822 = vmatprep.subr.bf16.mxu0 0
        %1823 = vmatpush1.bf16.msra.mxu0 0
        %1824 = vmatprep.subr.bf16.mxu0 0
        %1825 = vmatpush1.bf16.msra.mxu0 0
        %1826 = vmatprep.subr.bf16.mxu0 0
        %1827 = vmatpush1.bf16.msra.mxu0 0
        %1828 = vmatprep.subr.bf16.mxu0 0
        %1829 = vmatpush1.bf16.msra.mxu0 0
        %1830 = vmatprep.subr.bf16.mxu0 0
        %1831 = vmatpush1.bf16.msra.mxu0 0
        %1832 = vmatprep.mubr.bf16.mxu0 0
        %1833 = vmatmul.mubr.bf16.gmra.mrb[0].mxu0 %v1750
        %v1834 = vpop.f32.mrb[0].mxu0
        %v1835 = vadd.f32 0.0, %v1834
        %v1836 = vpop.f32.mrb[0].mxu0
        %v1837 = vpop.f32.mrb[0].mxu0
        %v1838 = vpop.f32.mrb[0].mxu0
        %1839 = vdwg.mxu0
        %v1840 = vadd.f32 %v1730, %v1835
        %s1841 = scalar_lea.vmem [#allocation10], 512
        %v1842 = vld [vmem:[%s1841] sm:$0xf]
        %v1843 = vld [vmem:[%s1841 + $0x4] sm:$0xf]
        %v1844 = vld [vmem:[%s1841 + $0x8] sm:$0xf]
        %v1845 = vld [vmem:[%s1841 + $0xc] sm:$0xf]
        %v1846 = vld [vmem:[%s1841 + $0x10] sm:$0xf]
        %v1847 = vld [vmem:[%s1841 + $0x14] sm:$0xf]
        %v1848 = vld [vmem:[%s1841 + $0x18] sm:$0xf]
        %v1849 = vld [vmem:[%s1841 + $0x1c] sm:$0xf]
        %v1850 = vld [vmem:[%s1841 + $0x20] sm:$0xf]
        %v1851 = vld [vmem:[%s1841 + $0x24] sm:$0xf]
        %v1852 = vld [vmem:[%s1841 + $0x28] sm:$0xf]
        %v1853 = vld [vmem:[%s1841 + $0x2c] sm:$0xf]
        %v1854 = vld [vmem:[%s1841 + $0x30] sm:$0xf]
        %v1855 = vld [vmem:[%s1841 + $0x34] sm:$0xf]
        %v1856 = vld [vmem:[%s1841 + $0x38] sm:$0xf]
        %v1857 = vld [vmem:[%s1841 + $0x3c] sm:$0xf]
        %v1858 = vrot.slane %v968, 4
        %v1876 = vunpack.c.l.b16 %v1842
        %v1877 = vunpack.c.l.b16 %v1843
        %v1878 = vunpack.c.l.b16 %v1844
        %v1879 = vunpack.c.l.b16 %v1845
        %v1880 = vunpack.c.l.b16 %v1846
        %v1881 = vunpack.c.l.b16 %v1847
        %v1882 = vunpack.c.l.b16 %v1848
        %v1883 = vunpack.c.l.b16 %v1849
        %v1884 = vunpack.c.l.b16 %v1850
        %v1885 = vunpack.c.l.b16 %v1851
        %v1886 = vunpack.c.l.b16 %v1852
        %v1887 = vunpack.c.l.b16 %v1853
        %v1888 = vunpack.c.l.b16 %v1854
        %v1889 = vunpack.c.l.b16 %v1855
        %v1890 = vunpack.c.l.b16 %v1856
        %v1891 = vunpack.c.l.b16 %v1857
        %v1892 = vpack.c.b16 %v1877, %v1876
        %v1893 = vpack.c.b16 %v1879, %v1878
        %v1894 = vpack.c.b16 %v1881, %v1880
        %v1895 = vpack.c.b16 %v1883, %v1882
        %v1896 = vpack.c.b16 %v1885, %v1884
        %v1897 = vpack.c.b16 %v1887, %v1886
        %v1898 = vpack.c.b16 %v1889, %v1888
        %v1899 = vpack.c.b16 %v1891, %v1890
        %1908 = vmatprep.subr.bf16.mxu0 0
        %1909 = vmatpush1.bf16.msra.mxu0 %v1892
        %1910 = vmatprep.subr.bf16.mxu0 0
        %1911 = vmatpush1.bf16.msra.mxu0 %v1893
        %1912 = vmatprep.subr.bf16.mxu0 0
        %1913 = vmatpush1.bf16.msra.mxu0 %v1894
        %1914 = vmatprep.subr.bf16.mxu0 0
        %1915 = vmatpush1.bf16.msra.mxu0 %v1895
        %1916 = vmatprep.subr.bf16.mxu0 0
        %1917 = vmatpush1.bf16.msra.mxu0 %v1896
        %1918 = vmatprep.subr.bf16.mxu0 0
        %1919 = vmatpush1.bf16.msra.mxu0 %v1897
        %1920 = vmatprep.subr.bf16.mxu0 0
        %1921 = vmatpush1.bf16.msra.mxu0 %v1898
        %1922 = vmatprep.subr.bf16.mxu0 0
        %1923 = vmatpush1.bf16.msra.mxu0 %v1899
        %1924 = vmatprep.subr.bf16.mxu0 0
        %1925 = vmatpush1.bf16.msra.mxu0 0
        %1926 = vmatprep.subr.bf16.mxu0 0
        %1927 = vmatpush1.bf16.msra.mxu0 0
        %1928 = vmatprep.subr.bf16.mxu0 0
        %1929 = vmatpush1.bf16.msra.mxu0 0
        %1930 = vmatprep.subr.bf16.mxu0 0
        %1931 = vmatpush1.bf16.msra.mxu0 0
        %1932 = vmatprep.subr.bf16.mxu0 0
        %1933 = vmatpush1.bf16.msra.mxu0 0
        %1934 = vmatprep.subr.bf16.mxu0 0
        %1935 = vmatpush1.bf16.msra.mxu0 0
        %1936 = vmatprep.subr.bf16.mxu0 0
        %1937 = vmatpush1.bf16.msra.mxu0 0
        %1938 = vmatprep.subr.bf16.mxu0 0
        %1939 = vmatpush1.bf16.msra.mxu0 0
        %1940 = vmatprep.mubr.bf16.mxu0 0
        %1941 = vmatmul.mubr.bf16.gmra.mrb[0].mxu0 %v1858
        %v1942 = vpop.f32.mrb[0].mxu0
        %v1943 = vadd.f32 0.0, %v1942
        %v1944 = vpop.f32.mrb[0].mxu0
        %v1945 = vpop.f32.mrb[0].mxu0
        %v1946 = vpop.f32.mrb[0].mxu0
        %1947 = vdwg.mxu0
        %v1948 = vadd.f32 %v1840, %v1943
        %v1949 = vld [vmem:[%s6] sm:$0x1]
        %v1951 = vlaneseq
        %v1952 = vshrl.u32 %v1951, 7
        %v1953 = vsub.s32 0, %v1952
        %v1954 = vrot.slane %v1949, %v1953
        %v1956 = vadd.f32 %v1948, %v1954
        %1957 = vst [vmem:[#allocation2] sm:$0xff] %v878
        %v1958 = vpack.c.bf16 %v1956, %v1956
        %v1959 = vld [vmem:[#allocation12] sm:$0xff]
        %v1960 = vld [vmem:[#allocation12 + $0x8] sm:$0xff]
        %v1961 = vld [vmem:[#allocation12 + $0x10] sm:$0xff]
        %v1962 = vld [vmem:[#allocation12 + $0x18] sm:$0xff]
        %v1963 = vld [vmem:[#allocation12 + $0x20] sm:$0xff]
        %v1964 = vld [vmem:[#allocation12 + $0x28] sm:$0xff]
        %v1965 = vld [vmem:[#allocation12 + $0x30] sm:$0xff]
        %v1966 = vld [vmem:[#allocation12 + $0x38] sm:$0xff]
        %v1967 = vld [vmem:[#allocation12 + $0x40] sm:$0xff]
        %v1968 = vld [vmem:[#allocation12 + $0x48] sm:$0xff]
        %v1969 = vld [vmem:[#allocation12 + $0x50] sm:$0xff]
        %v1970 = vld [vmem:[#allocation12 + $0x58] sm:$0xff]
        %v1971 = vld [vmem:[#allocation12 + $0x60] sm:$0xff]
        %v1972 = vld [vmem:[#allocation12 + $0x68] sm:$0xff]
        %v1973 = vld [vmem:[#allocation12 + $0x70] sm:$0xff]
        %v1974 = vld [vmem:[#allocation12 + $0x78] sm:$0xff]
        %v1975 = vld [vmem:[%s8] sm:$0x3]
        %v1977 = vlaneseq
        %v1978 = vshrl.u32 %v1977, 7
        %v1979 = vsub.s32 0, %v1978
        %v1980 = vrot.slane %v1975, %v1979
        %v1981 = vlaneseq
        %v1982 = vshrl.u32 %v1981, 7
        %v1983 = vsub.s32 1, %v1982
        %v1984 = vrot.slane %v1975, %v1983
        %v2003 = vunpack.c.l.b16 %v1959
        %v2004 = vunpack.c.h.b16 %v1959
        %v2005 = vunpack.c.l.b16 %v1960
        %v2006 = vunpack.c.h.b16 %v1960
        %v2007 = vunpack.c.l.b16 %v1961
        %v2008 = vunpack.c.h.b16 %v1961
        %v2009 = vunpack.c.l.b16 %v1962
        %v2010 = vunpack.c.h.b16 %v1962
        %v2011 = vunpack.c.l.b16 %v1963
        %v2012 = vunpack.c.h.b16 %v1963
        %v2013 = vunpack.c.l.b16 %v1964
        %v2014 = vunpack.c.h.b16 %v1964
        %v2015 = vunpack.c.l.b16 %v1965
        %v2016 = vunpack.c.h.b16 %v1965
        %v2017 = vunpack.c.l.b16 %v1966
        %v2018 = vunpack.c.h.b16 %v1966
        %v2019 = vunpack.c.l.b16 %v1967
        %v2020 = vunpack.c.h.b16 %v1967
        %v2021 = vunpack.c.l.b16 %v1968
        %v2022 = vunpack.c.h.b16 %v1968
        %v2023 = vunpack.c.l.b16 %v1969
        %v2024 = vunpack.c.h.b16 %v1969
        %v2025 = vunpack.c.l.b16 %v1970
        %v2026 = vunpack.c.h.b16 %v1970
        %v2027 = vunpack.c.l.b16 %v1971
        %v2028 = vunpack.c.h.b16 %v1971
        %v2029 = vunpack.c.l.b16 %v1972
        %v2030 = vunpack.c.h.b16 %v1972
        %v2031 = vunpack.c.l.b16 %v1973
        %v2032 = vunpack.c.h.b16 %v1973
        %v2033 = vunpack.c.l.b16 %v1974
        %v2034 = vunpack.c.h.b16 %v1974
        %v2035 = vpack.c.b16 %v2005, %v2003
        %v2036 = vpack.c.b16 %v2006, %v2004
        %v2037 = vpack.c.b16 %v2009, %v2007
        %v2038 = vpack.c.b16 %v2010, %v2008
        %v2039 = vpack.c.b16 %v2013, %v2011
        %v2040 = vpack.c.b16 %v2014, %v2012
        %v2041 = vpack.c.b16 %v2017, %v2015
        %v2042 = vpack.c.b16 %v2018, %v2016
        %v2043 = vpack.c.b16 %v2021, %v2019
        %v2044 = vpack.c.b16 %v2022, %v2020
        %v2045 = vpack.c.b16 %v2025, %v2023
        %v2046 = vpack.c.b16 %v2026, %v2024
        %v2047 = vpack.c.b16 %v2029, %v2027
        %v2048 = vpack.c.b16 %v2030, %v2028
        %v2049 = vpack.c.b16 %v2033, %v2031
        %v2050 = vpack.c.b16 %v2034, %v2032
        %2067 = vmatprep.subr.bf16.mxu0 %v2036
        %2068 = vmatpush1.bf16.msra.mxu0 %v2035
        %2069 = vmatprep.subr.bf16.mxu0 %v2038
        %2070 = vmatpush1.bf16.msra.mxu0 %v2037
        %2071 = vmatprep.subr.bf16.mxu0 %v2040
        %2072 = vmatpush1.bf16.msra.mxu0 %v2039
        %2073 = vmatprep.subr.bf16.mxu0 %v2042
        %2074 = vmatpush1.bf16.msra.mxu0 %v2041
        %2075 = vmatprep.subr.bf16.mxu0 %v2044
        %2076 = vmatpush1.bf16.msra.mxu0 %v2043
        %2077 = vmatprep.subr.bf16.mxu0 %v2046
        %2078 = vmatpush1.bf16.msra.mxu0 %v2045
        %2079 = vmatprep.subr.bf16.mxu0 %v2048
        %2080 = vmatpush1.bf16.msra.mxu0 %v2047
        %2081 = vmatprep.subr.bf16.mxu0 %v2050
        %2082 = vmatpush1.bf16.msra.mxu0 %v2049
        %2083 = vmatprep.subr.bf16.mxu0 0
        %2084 = vmatpush1.bf16.msra.mxu0 0
        %2085 = vmatprep.subr.bf16.mxu0 0
        %2086 = vmatpush1.bf16.msra.mxu0 0
        %2087 = vmatprep.subr.bf16.mxu0 0
        %2088 = vmatpush1.bf16.msra.mxu0 0
        %2089 = vmatprep.subr.bf16.mxu0 0
        %2090 = vmatpush1.bf16.msra.mxu0 0
        %2091 = vmatprep.subr.bf16.mxu0 0
        %2092 = vmatpush1.bf16.msra.mxu0 0
        %2093 = vmatprep.subr.bf16.mxu0 0
        %2094 = vmatpush1.bf16.msra.mxu0 0
        %2095 = vmatprep.subr.bf16.mxu0 0
        %2096 = vmatpush1.bf16.msra.mxu0 0
        %2097 = vmatprep.subr.bf16.mxu0 0
        %2098 = vmatpush1.bf16.msra.mxu0 0
        %2099 = vmatprep.mubr.bf16.mxu0 0
        %2100 = vmatmul.mubr.bf16.gmra.mrb[0].mxu0 %v1958
        %v2101 = vpop.f32.mrb[0].mxu0
        %v2102 = vadd.f32 %v1980, %v2101
        %v2103 = vpop.f32.mrb[0].mxu0
        %v2104 = vadd.f32 %v1984, %v2103
        %v2105 = vpop.f32.mrb[0].mxu0
        %v2106 = vpop.f32.mrb[0].mxu0
        %2107 = vdwg.mxu0
        %v2108 = vsub.f32 0.0, %v2102
        %v2109 = vsub.f32 0.0, %v2104
        %v2110 = vmul.f32 %v2108, 1.442695
        %v2111 = vpow.pop %v2110
        %v2112 = vmul.f32 %v2109, 1.442695
        %v2113 = vpow.pop %v2112
        %v2114 = vadd.f32 %v2111, 1.0
        %v2115 = vadd.f32 %v2113, 1.0
        %v2116 = vrcp.pop %v2114
        %v2117 = vrcp.pop %v2115
        %v2118 = vld [vmem:[%s9] sm:$0x1]
        %v2120 = vlaneseq
        %v2121 = vshrl.u32 %v2120, 7
        %v2122 = vsub.s32 0, %v2121
        %v2123 = vrot.slane %v2118, %v2122
        %v2125 = vmul.f32 %v2117, %v2123
        %v2126 = vmul.f32 %v2125, 1.442695
        %v2127 = vpow.pop %v2126
        %v2128 = vmul.f32 %v2127, %v2127
        %v2129 = vsub.f32 1.0, %v2128
        %v2130 = vmax.f32 %v2129, 0.0
        %v2131 = vrsqrt.pop %v2130
        %v2132 = vmul.f32 %v2130, %v2131
        %vm2133 = vcmp.eq.f32.partialorder %v2130, inf
        %v2134 = vsel %vm2133, %v2130, %v2132
        %vm2135 = vcmp.eq.f32.partialorder %v2130, 0.0
        %v2136 = vand.u32 %v2130, 2147483648
        %v2137 = vsel %vm2135, %v2136, %v2134
        %v2138 = vmul.f32 %v2137, %v2116
        %v2139 = vmul.f32 %v2138, %v1956
        %v2140 = vlaneseq
        %v2141 = vshrl.u32 %v2140, 7
        %vm2142 = vcmp.ge.s32.totalorder %v2141, 1
        %v2143 = vrot.slane %v2127, 7
        %v2144 = vsel %vm2142, %v2143, 1.0
        %v2145 = vrot.slane %v2139, 7
        %v2146 = vsel %vm2142, %v2145, 0.0
        %v2147 = vmul.f32 %v2127, %v2146
        %v2148 = vadd.f32 %v2147, %v2139
        %v2149 = vmul.f32 %v2144, %v2127
        %vm2150 = vcmp.ge.s32.totalorder %v2141, 2
        %v2151 = vrot.slane %v2149, 6
        %v2152 = vsel %vm2150, %v2151, 1.0
        %v2153 = vrot.slane %v2148, 6
        %v2154 = vsel %vm2150, %v2153, 0.0
        %v2155 = vmul.f32 %v2149, %v2154
        %v2156 = vadd.f32 %v2155, %v2148
        %v2157 = vmul.f32 %v2152, %v2149
        %vm2158 = vcmp.ge.s32.totalorder %v2141, 4
        %v2159 = vrot.slane %v2157, 4
        %v2160 = vsel %vm2158, %v2159, 1.0
        %v2161 = vrot.slane %v2156, 4
        %v2162 = vsel %vm2158, %v2161, 0.0
        %v2163 = vmul.f32 %v2157, %v2162
        %v2164 = vadd.f32 %v2163, %v2156
        %v2165 = vmul.f32 %v2160, %v2157
        %v2166 = vld [vmem:[#allocation3] sm:$0x1]
        %v2168 = vlaneseq
        %v2169 = vshrl.u32 %v2168, 7
        %v2170 = vsub.s32 0, %v2169
        %v2171 = vrot.slane %v2166, %v2170
        %v2173 = vmul.f32 %v2165, %v2171
        %v2174 = vadd.f32 %v2173, %v2164
        %2175 = vst [vmem:[#allocation3 - $0x7] sm:$0x80] %v2174
        %2176 = vst [vmem:[%s697 - $0x7] sm:$0x80] %v2174
        %v2177 = vmul.f32 %v2174, %v892
        %v2178 = vadd.f32 %v2177, %v730
        %v2179 = vmul.f32 %v2178, %v2178
        %2180 = vadd.xlane.f32.xlu0 %v2179
        %v2181 = vpop.xlane.xlu0 %2180
        %v2182 = vrsqrt.pop %v2181
        %v2183 = vmul.f32 %v2181, %v2182
        %vm2184 = vcmp.eq.f32.partialorder %v2181, inf
        %v2185 = vsel %vm2184, %v2181, %v2183
        %vm2186 = vcmp.eq.f32.partialorder %v2181, 0.0
        %v2187 = vand.u32 %v2181, 2147483648
        %v2188 = vsel %vm2186, %v2187, %v2185
        %v2189 = vadd.f32 %v2188, 1e-06
        %v2190 = vrcp.pop %v2189
        %v2191 = vmul.f32 %v2178, %v2190
        %v2192 = vmul.f32 %v2191, %v748
        %v2193 = vpack.c.bf16 %v2192, %v2192
        %v2194 = vld [vmem:[#allocation13] sm:$0xf]
        %v2195 = vld [vmem:[#allocation13 + $0x4] sm:$0xf]
        %v2196 = vld [vmem:[#allocation13 + $0x8] sm:$0xf]
        %v2197 = vld [vmem:[#allocation13 + $0xc] sm:$0xf]
        %v2198 = vld [vmem:[#allocation13 + $0x10] sm:$0xf]
        %v2199 = vld [vmem:[#allocation13 + $0x14] sm:$0xf]
        %v2200 = vld [vmem:[#allocation13 + $0x18] sm:$0xf]
        %v2201 = vld [vmem:[#allocation13 + $0x1c] sm:$0xf]
        %v2202 = vld [vmem:[#allocation13 + $0x20] sm:$0xf]
        %v2203 = vld [vmem:[#allocation13 + $0x24] sm:$0xf]
        %v2204 = vld [vmem:[#allocation13 + $0x28] sm:$0xf]
        %v2205 = vld [vmem:[#allocation13 + $0x2c] sm:$0xf]
        %v2206 = vld [vmem:[#allocation13 + $0x30] sm:$0xf]
        %v2207 = vld [vmem:[#allocation13 + $0x34] sm:$0xf]
        %v2208 = vld [vmem:[#allocation13 + $0x38] sm:$0xf]
        %v2209 = vld [vmem:[#allocation13 + $0x3c] sm:$0xf]
        %v2210 = vld [vmem:[%s12] sm:$0x1]
        %v2212 = vlaneseq
        %v2213 = vshrl.u32 %v2212, 7
        %v2214 = vsub.s32 0, %v2213
        %v2215 = vrot.slane %v2210, %v2214
        %v2233 = vunpack.c.l.b16 %v2194
        %v2234 = vunpack.c.l.b16 %v2195
        %v2235 = vunpack.c.l.b16 %v2196
        %v2236 = vunpack.c.l.b16 %v2197
        %v2237 = vunpack.c.l.b16 %v2198
        %v2238 = vunpack.c.l.b16 %v2199
        %v2239 = vunpack.c.l.b16 %v2200
        %v2240 = vunpack.c.l.b16 %v2201
        %v2241 = vunpack.c.l.b16 %v2202
        %v2242 = vunpack.c.l.b16 %v2203
        %v2243 = vunpack.c.l.b16 %v2204
        %v2244 = vunpack.c.l.b16 %v2205
        %v2245 = vunpack.c.l.b16 %v2206
        %v2246 = vunpack.c.l.b16 %v2207
        %v2247 = vunpack.c.l.b16 %v2208
        %v2248 = vunpack.c.l.b16 %v2209
        %v2249 = vpack.c.b16 %v2234, %v2233
        %v2250 = vpack.c.b16 %v2236, %v2235
        %v2251 = vpack.c.b16 %v2238, %v2237
        %v2252 = vpack.c.b16 %v2240, %v2239
        %v2253 = vpack.c.b16 %v2242, %v2241
        %v2254 = vpack.c.b16 %v2244, %v2243
        %v2255 = vpack.c.b16 %v2246, %v2245
        %v2256 = vpack.c.b16 %v2248, %v2247
        %2265 = vmatprep.subr.bf16.mxu0 0
        %2266 = vmatpush1.bf16.msra.mxu0 %v2249
        %2267 = vmatprep.subr.bf16.mxu0 0
        %2268 = vmatpush1.bf16.msra.mxu0 %v2250
        %2269 = vmatprep.subr.bf16.mxu0 0
        %2270 = vmatpush1.bf16.msra.mxu0 %v2251
        %2271 = vmatprep.subr.bf16.mxu0 0
        %2272 = vmatpush1.bf16.msra.mxu0 %v2252
        %2273 = vmatprep.subr.bf16.mxu0 0
        %2274 = vmatpush1.bf16.msra.mxu0 %v2253
        %2275 = vmatprep.subr.bf16.mxu0 0
        %2276 = vmatpush1.bf16.msra.mxu0 %v2254
        %2277 = vmatprep.subr.bf16.mxu0 0
        %2278 = vmatpush1.bf16.msra.mxu0 %v2255
        %2279 = vmatprep.subr.bf16.mxu0 0
        %2280 = vmatpush1.bf16.msra.mxu0 %v2256
        %2281 = vmatprep.subr.bf16.mxu0 0
        %2282 = vmatpush1.bf16.msra.mxu0 0
        %2283 = vmatprep.subr.bf16.mxu0 0
        %2284 = vmatpush1.bf16.msra.mxu0 0
        %2285 = vmatprep.subr.bf16.mxu0 0
        %2286 = vmatpush1.bf16.msra.mxu0 0
        %2287 = vmatprep.subr.bf16.mxu0 0
        %2288 = vmatpush1.bf16.msra.mxu0 0
        %2289 = vmatprep.subr.bf16.mxu0 0
        %2290 = vmatpush1.bf16.msra.mxu0 0
        %2291 = vmatprep.subr.bf16.mxu0 0
        %2292 = vmatpush1.bf16.msra.mxu0 0
        %2293 = vmatprep.subr.bf16.mxu0 0
        %2294 = vmatpush1.bf16.msra.mxu0 0
        %2295 = vmatprep.subr.bf16.mxu0 0
        %2296 = vmatpush1.bf16.msra.mxu0 0
        %2297 = vmatprep.mubr.bf16.mxu0 0
        %2298 = vmatmul.mubr.bf16.gmra.mrb[0].mxu0 %v2193
        %v2299 = vpop.f32.mrb[0].mxu0
        %v2300 = vadd.f32 %v2215, %v2299
        %v2301 = vpop.f32.mrb[0].mxu0
        %v2302 = vpop.f32.mrb[0].mxu0
        %v2303 = vpop.f32.mrb[0].mxu0
        %2304 = vdwg.mxu0
        %v2305 = vmul.f32 %v2300, 0.5
        %v2306 = vmul.f32 %v2300, 0.044715
        %v2307 = vmul.f32 %v2306, %v2300
        %v2308 = vmul.f32 %v2307, %v2300
        %v2309 = vadd.f32 %v2300, %v2308
        %v2310 = vmul.f32 %v2309, 0.7978846
        %v2311 = vtanh.pop %v2310
        %v2312 = vadd.f32 %v2311, 1.0
        %v2313 = vmul.f32 %v2305, %v2312
        %v2314 = vmul.f32 %v2313, %v2300
        %v2315 = vpack.c.bf16 %v2314, %v2314
        %v2316 = vld [vmem:[#allocation15] sm:$0xf]
        %v2317 = vld [vmem:[#allocation15 + $0x4] sm:$0xf]
        %v2318 = vld [vmem:[#allocation15 + $0x8] sm:$0xf]
        %v2319 = vld [vmem:[#allocation15 + $0xc] sm:$0xf]
        %v2320 = vld [vmem:[#allocation15 + $0x10] sm:$0xf]
        %v2321 = vld [vmem:[#allocation15 + $0x14] sm:$0xf]
        %v2322 = vld [vmem:[#allocation15 + $0x18] sm:$0xf]
        %v2323 = vld [vmem:[#allocation15 + $0x1c] sm:$0xf]
        %v2324 = vld [vmem:[#allocation15 + $0x20] sm:$0xf]
        %v2325 = vld [vmem:[#allocation15 + $0x24] sm:$0xf]
        %v2326 = vld [vmem:[#allocation15 + $0x28] sm:$0xf]
        %v2327 = vld [vmem:[#allocation15 + $0x2c] sm:$0xf]
        %v2328 = vld [vmem:[#allocation15 + $0x30] sm:$0xf]
        %v2329 = vld [vmem:[#allocation15 + $0x34] sm:$0xf]
        %v2330 = vld [vmem:[#allocation15 + $0x38] sm:$0xf]
        %v2331 = vld [vmem:[#allocation15 + $0x3c] sm:$0xf]
        %v2332 = vld [vmem:[%s14] sm:$0x1]
        %v2334 = vlaneseq
        %v2335 = vshrl.u32 %v2334, 7
        %v2336 = vsub.s32 0, %v2335
        %v2337 = vrot.slane %v2332, %v2336
        %v2355 = vunpack.c.l.b16 %v2316
        %v2356 = vunpack.c.l.b16 %v2317
        %v2357 = vunpack.c.l.b16 %v2318
        %v2358 = vunpack.c.l.b16 %v2319
        %v2359 = vunpack.c.l.b16 %v2320
        %v2360 = vunpack.c.l.b16 %v2321
        %v2361 = vunpack.c.l.b16 %v2322
        %v2362 = vunpack.c.l.b16 %v2323
        %v2363 = vunpack.c.l.b16 %v2324
        %v2364 = vunpack.c.l.b16 %v2325
        %v2365 = vunpack.c.l.b16 %v2326
        %v2366 = vunpack.c.l.b16 %v2327
        %v2367 = vunpack.c.l.b16 %v2328
        %v2368 = vunpack.c.l.b16 %v2329
        %v2369 = vunpack.c.l.b16 %v2330
        %v2370 = vunpack.c.l.b16 %v2331
        %v2371 = vpack.c.b16 %v2356, %v2355
        %v2372 = vpack.c.b16 %v2358, %v2357
        %v2373 = vpack.c.b16 %v2360, %v2359
        %v2374 = vpack.c.b16 %v2362, %v2361
        %v2375 = vpack.c.b16 %v2364, %v2363
        %v2376 = vpack.c.b16 %v2366, %v2365
        %v2377 = vpack.c.b16 %v2368, %v2367
        %v2378 = vpack.c.b16 %v2370, %v2369
        %2387 = vmatprep.subr.bf16.mxu0 0
        %2388 = vmatpush1.bf16.msra.mxu0 %v2371
        %2389 = vmatprep.subr.bf16.mxu0 0
        %2390 = vmatpush1.bf16.msra.mxu0 %v2372
        %2391 = vmatprep.subr.bf16.mxu0 0
        %2392 = vmatpush1.bf16.msra.mxu0 %v2373
        %2393 = vmatprep.subr.bf16.mxu0 0
        %2394 = vmatpush1.bf16.msra.mxu0 %v2374
        %2395 = vmatprep.subr.bf16.mxu0 0
        %2396 = vmatpush1.bf16.msra.mxu0 %v2375
        %2397 = vmatprep.subr.bf16.mxu0 0
        %2398 = vmatpush1.bf16.msra.mxu0 %v2376
        %2399 = vmatprep.subr.bf16.mxu0 0
        %2400 = vmatpush1.bf16.msra.mxu0 %v2377
        %2401 = vmatprep.subr.bf16.mxu0 0
        %2402 = vmatpush1.bf16.msra.mxu0 %v2378
        %2403 = vmatprep.subr.bf16.mxu0 0
        %2404 = vmatpush1.bf16.msra.mxu0 0
        %2405 = vmatprep.subr.bf16.mxu0 0
        %2406 = vmatpush1.bf16.msra.mxu0 0
        %2407 = vmatprep.subr.bf16.mxu0 0
        %2408 = vmatpush1.bf16.msra.mxu0 0
        %2409 = vmatprep.subr.bf16.mxu0 0
        %2410 = vmatpush1.bf16.msra.mxu0 0
        %2411 = vmatprep.subr.bf16.mxu0 0
        %2412 = vmatpush1.bf16.msra.mxu0 0
        %2413 = vmatprep.subr.bf16.mxu0 0
        %2414 = vmatpush1.bf16.msra.mxu0 0
        %2415 = vmatprep.subr.bf16.mxu0 0
        %2416 = vmatpush1.bf16.msra.mxu0 0
        %2417 = vmatprep.subr.bf16.mxu0 0
        %2418 = vmatpush1.bf16.msra.mxu0 0
        %2419 = vmatprep.mubr.bf16.mxu0 0
        %2420 = vmatmul.mubr.bf16.gmra.mrb[0].mxu0 %v2315
        %v2421 = vpop.f32.mrb[0].mxu0
        %v2422 = vadd.f32 %v2337, %v2421
        %v2423 = vpop.f32.mrb[0].mxu0
        %v2424 = vpop.f32.mrb[0].mxu0
        %v2425 = vpop.f32.mrb[0].mxu0
        %2426 = vdwg.mxu0
        %v2427 = vadd.f32 %v2178, %v2422
        %2428 = vst [vmem:[%s691] sm:$0xff] %v2427
        %s2429 = sand.u32 %s404, 1
        %s2430 = scalar_lea.sflag [#allocation6], %s2429
        %s2431 = sand.u32 %s404, 1
        %s2432 = smul.addr %s2431, 8
        %s2433 = scalar_lea.vmem [#allocation16], %s2432
        %s2434 = sand.u32 %s430, 1
        %s2435 = scalar_lea.sflag [#allocation18], %s2434
        %s2436 = sand.u32 %s430, 1
        %s2437 = scalar_lea.vmem [#allocation17], %s2436
        // Predicated region
        $region113: #{tpu_custom_call.1} parent=79 // pred_check
          %p2438 = pneg %p414
        $region114: #{tpu_custom_call.1} parent=79 // pred_check_branch
          %2440 = sbr.rel (%p2438) target = $region116
        $region115: #{tpu_custom_call.1} parent=79 // pred_region
          %s2442 = ssub.s32 128, 128
          %2443 = vsyncadd %s2430, %s2442
          %s2444 = smul.addr %s46, 2
          %s2445 = sadd.s32 %s47, %s2444
          %s2446 = smul.addr %s2445, 128
          %s2447 = scalar_lea.hbm %s15, %s2446
          %s2449 = sshll.u32 %s2433, 4
          %s2450 = int_to_ptr.vmem [resolvable:$true] %s2449
          %2452 = dma.vmem_to_hbm [thread:$0]  %s2450, 128, %s2447, %s2430
        $region116: #{tpu_custom_call.1} parent=79 // pred_fallthru
          _
        // Predicated region
        $region117: #{tpu_custom_call.1} parent=79 // pred_check
          %p2453 = pneg %p440
        $region118: #{tpu_custom_call.1} parent=79 // pred_check_branch
          %2455 = sbr.rel (%p2453) target = $region120
        $region119: #{tpu_custom_call.1} parent=79 // pred_region
          %s2457 = ssub.s32 16, 16
          %2458 = vsyncadd %s2435, %s2457
          %s2459 = smul.addr %s46, 16
          %s2460 = scalar_lea.hbm %s16, %s2459
          %s2462 = sshll.u32 %s2437, 4
          %s2463 = int_to_ptr.vmem [resolvable:$true] %s2462
          %2465 = dma.vmem_to_hbm [thread:$0]  %s2463, 16, %s2460, %s2435
        $region120: #{tpu_custom_call.1} parent=79 // pred_fallthru
          _
      $region80: #{tpu_custom_call.1} parent=5 // pred_fallthru
        _
      %p2466 = scmp.le.s32.totalorder 2, %s37
      // Predicated region
      $region121: #{tpu_custom_call.1} parent=5 // pred_check
        %p2467 = pneg %p2466
      $region122: #{tpu_custom_call.1} parent=5 // pred_check_branch
        %2469 = sbr.rel (%p2467) target = $region124
      $region123: #{tpu_custom_call.1} parent=5 // pred_region
        %s2470 = ssub.s32 %s37, 2
        // Predicated region
        $region125: #{tpu_custom_call.1} parent=123 // pred_check
          %p2471 = pneg %p420
        $region126: #{tpu_custom_call.1} parent=123 // pred_check_branch
          %2473 = sbr.rel (%p2471) target = $region128
        $region127: #{tpu_custom_call.1} parent=123 // pred_region
          %s2474 = sand.u32 %s405, 1
          %s2475 = scalar_lea.sflag [#allocation6], %s2474
          %s2476 = sand.u32 %s405, 1
          %s2477 = smul.addr %s2476, 8
          %s2478 = scalar_lea.vmem [#allocation16], %s2477
          %2479 = dma.done %s2475, 128
        $region128: #{tpu_custom_call.1} parent=123 // pred_fallthru
          _
        // Predicated region
        $region129: #{tpu_custom_call.1} parent=123 // pred_check
          %p2480 = pneg %p446
        $region130: #{tpu_custom_call.1} parent=123 // pred_check_branch
          %2482 = sbr.rel (%p2480) target = $region132
        $region131: #{tpu_custom_call.1} parent=123 // pred_region
          %s2483 = sand.u32 %s431, 1
          %s2484 = scalar_lea.sflag [#allocation18], %s2483
          %s2485 = sand.u32 %s431, 1
          %s2486 = scalar_lea.vmem [#allocation17], %s2485
          %2487 = dma.done %s2484, 16
        $region132: #{tpu_custom_call.1} parent=123 // pred_fallthru
          _
      $region124: #{tpu_custom_call.1} parent=5 // pred_fallthru
        _
    $region6: #{tpu_custom_call.1} parent=1 // loop_footer
      %s41 = sadd.s32 1, %s37
    $region7: #{tpu_custom_call.1} parent=1 // loop_footer_branch
      %36 = sbr.rel target = $region3
    $region8: #{tpu_custom_call.1} parent=1 // loop_exit
      _
    %2488 = vsyncpa [#allocation5], 1
    %s2489 = scalar_lea.sflag [#allocation5], 1
    %2490 = vsyncpa %s2489, 1
    %2491 = vsyncpa [#allocation8], 1
    %s2492 = scalar_lea.sflag [#allocation8], 1
    %2493 = vsyncpa %s2492, 1
    %2494 = vsyncpa [#allocation11], 1
    %2495 = vsyncpa [#allocation14], 1
    %2496 = vsyncpa [#allocation6], 1
    %s2497 = scalar_lea.sflag [#allocation6], 1
    %2498 = vsyncpa %s2497, 1
    %2499 = vsyncpa [#allocation18], 1
    %s2500 = scalar_lea.sflag [#allocation18], 1
    %2501 = vsyncpa %s2500, 1

</llo_original>
